<compile_context>
chip_gen: v7x
topology: tpu7x:2x2x1
jax: 0.10.0
libtpu: 0.0.40
codegen_flags: <defaults>
</compile_context>

<pallas_src>
import functools

import jax
import jax.numpy as jnp
from jax import lax
from jax.experimental import pallas as pl
from jax.experimental.pallas import tpu as pltpu

EMBED_SIZE = 256
HEADS = 8
HEAD_DIM = EMBED_SIZE // HEADS


def attention_kernel(v_ref, k_ref, q_ref, mbias_ref,
                     wv_ref, wk_ref, wq_ref, wo_ref, bo_ref,
                     out_ref, *, approx_recip):
    BB, Lv, E = v_ref.shape
    Lk = k_ref.shape[1]
    Lq = q_ref.shape[1]
    H, D = HEADS, HEAD_DIM
    cdt = wq_ref.dtype          # MXU compute dtype: bf16 (fast) or f32 (precise)

    # ---- Q/K/V projections: lane-dense (rows, 256) @ block-diagonal (256, 256).
    # Full 256-deep / 256-wide MXU fill; the in-kernel cast replaces the old
    # wrapper-side transpose+cast pass over HBM.
    v2 = v_ref[...].reshape(BB * Lv, E).astype(cdt)
    k2 = k_ref[...].reshape(BB * Lk, E).astype(cdt)
    q2 = q_ref[...].reshape(BB * Lq, E).astype(cdt)
    Vp = jnp.dot(v2, wv_ref[...], preferred_element_type=jnp.float32)
    Kp = jnp.dot(k2, wk_ref[...], preferred_element_type=jnp.float32)
    Qp = jnp.dot(q2, wq_ref[...], preferred_element_type=jnp.float32)  # 1/sqrt(E) folded into Wq

    Vp = Vp.reshape(BB, Lv, E).astype(cdt)
    Kp = Kp.reshape(BB, Lk, E).astype(cdt)
    Qp = Qp.reshape(BB, Lq, E).astype(cdt)

    # Additive mask broadcast hoisted out of the head loop (JAX does not CSE it).
    mbias = jnp.broadcast_to(mbias_ref[...][None], (BB, Lq, Lk))

    # ---- attention: the only place that genuinely needs per-head D=32
    # contraction. Static 32-lane slices of otherwise lane-dense operands.
    # TODO(synk): for long sequences add an Lk grid axis with online softmax
    # (flash pattern) so energy/p never materialize at full (Lq, Lk) in VMEM.
    ctx_parts = []
    for h in range(H):
        lo, hi = h * D, (h + 1) * D
        qh = Qp[:, :, lo:hi]
        kh = Kp[:, :, lo:hi]
        vh = Vp[:, :, lo:hi]
        # QK^T without an explicit transpose: contract the last dim of both sides.
        e = lax.dot_general(qh, kh, (((2,), (2,)), ((0,), (0,))),
                            preferred_element_type=jnp.float32)        # (BB, Lq, Lk)
        e = e + mbias
        # numerically stable softmax, all in f32 (v5e has no bf16 VPU/EUP path)
        e = e - jnp.max(e, axis=-1, keepdims=True)
        p = jnp.exp(e)
        p = p * pl.reciprocal(jnp.sum(p, axis=-1, keepdims=True),
                              approx=approx_recip)
        ctx_parts.append(
            lax.dot_general(p.astype(cdt), vh, (((2,), (1,)), ((0,), (0,))),
                            preferred_element_type=jnp.float32))       # (BB, Lq, D)

    # ---- output projection: interleave heads back into the lane dim once,
    # then ONE (BB*Lq, 256) @ (256, 256) matmul (K = 256, no per-head sum).
    ctx = jnp.concatenate(ctx_parts, axis=-1).astype(cdt)              # (BB, Lq, 256)
    out = jnp.dot(ctx.reshape(BB * Lq, E), wo_ref[...],
                  preferred_element_type=jnp.float32)
    out = out + bo_ref[...]
    out_ref[...] = out.reshape(BB, Lq, E).astype(out_ref.dtype)        # lane-dense E=256


def custom_attention(values, keys, query, mask, params, *,
                     precise=False, batch_block=None, out_dtype=jnp.float32):
    """Forward pass of the PyTorch CustomAttention module.

    precise=True : f32 MXU operands + exact reciprocal (accuracy checking).
    precise=False: bf16 MXU operands, f32 accumulation/softmax, EUP approx
                   reciprocal — the performance configuration (v5e/v6e/v7x).
    out_dtype    : pass jnp.bfloat16 on v5e to halve output writeback bytes if
                   the consumer tolerates it.
    """
    wv, wk, wq, wo, bo = params
    N, Lv, E = values.shape
    Lk = keys.shape[1]
    Lq = query.shape[1]
    assert E == EMBED_SIZE and Lk == Lv

    cdt = jnp.float32 if precise else jnp.bfloat16
    scale = 1.0 / (EMBED_SIZE ** 0.5)

    # torch Linear (y = x @ W.T) applied per 32-wide head slice of a lane-dense
    # (., 256) activation == one matmul against a 256x256 block-diagonal weight.
    eyeH = jnp.eye(HEADS, dtype=jnp.float32)
    Wv_blk = jnp.kron(eyeH, wv.T).astype(cdt)             # (256, 256)
    Wk_blk = jnp.kron(eyeH, wk.T).astype(cdt)
    Wq_blk = jnp.kron(eyeH, wq.T * scale).astype(cdt)     # fold 1/sqrt(E) into Wq
    WoT = wo.T.astype(cdt)                                # (256, 256) full fc_out weight
    Bo = bo.reshape(1, E).astype(jnp.float32)

    # Additive mask; matches masked_fill(-1e20) followed by /sqrt(E).
    # TODO(synk): if the real workload uses a per-batch/per-head mask, give it a
    # batch dim and block it with lambda n: (n, 0, 0) instead of sharing one.
    mask_bias = jnp.where(mask == 0, -1e20 * scale, 0.0).astype(jnp.float32)

    # Batch rows per grid step: large tiles for the HBM roofline, but capped at
    # N//2 so there are >=2 "parallel" steps to feed both TensorCores on v7x.
    if batch_block is None:
        target = max(1, 512 // max(1, Lq))
        cap = max(1, N // 2) if N >= 2 else 1
        batch_block = max(1, min(N, target, cap))
        while N % batch_block:
            batch_block -= 1
    BB = batch_block
    grid = (N // BB,)

    flops = int(2 * N * (Lv + Lk + Lq) * E * E             # Q/K/V projections
                + 4 * N * HEADS * Lq * Lk * HEAD_DIM       # QK^T + PV
                + 2 * N * Lq * E * E)                      # output projection
    transcendentals = int(N * HEADS * Lq * Lk)
    w_itemsize = 4 if precise else 2
    bytes_accessed = int(4 * (values.size + keys.size + query.size + N * Lq * E)
                         + 4 * mask_bias.size
                         + w_itemsize * 4 * E * E + 4 * E)

    kernel = pl.pallas_call(
        functools.partial(attention_kernel, approx_recip=not precise),
        out_shape=jax.ShapeDtypeStruct((N, Lq, E), out_dtype),
        grid_spec=pltpu.PrefetchScalarGridSpec(
            num_scalar_prefetch=0,
            grid=grid,
            in_specs=[
                pl.BlockSpec((BB, Lv, E), lambda n: (n, 0, 0)),   # values (f32, lane-dense)
                pl.BlockSpec((BB, Lk, E), lambda n: (n, 0, 0)),   # keys
                pl.BlockSpec((BB, Lq, E), lambda n: (n, 0, 0)),   # query
                pl.BlockSpec((Lq, Lk), lambda n: (0, 0)),         # additive mask bias
                pl.BlockSpec((E, E), lambda n: (0, 0)),           # block-diag Wv^T
                pl.BlockSpec((E, E), lambda n: (0, 0)),           # block-diag Wk^T
                pl.BlockSpec((E, E), lambda n: (0, 0)),           # block-diag Wq^T (pre-scaled)
                pl.BlockSpec((E, E), lambda n: (0, 0)),           # fc_out W^T (full 256x256)
                pl.BlockSpec((1, E), lambda n: (0, 0)),           # fc_out bias
            ],
            out_specs=pl.BlockSpec((BB, Lq, E), lambda n: (n, 0, 0)),
        ),
        # Weights/mask are tiny at E=256, so default double-buffering of the
        # constant-index inputs costs negligible VMEM; an explicit vmem_limit /
        # flash-style Lk grid axis only pays off for much larger L (see TODO).
        compiler_params=pltpu.CompilerParams(
            dimension_semantics=("parallel",)),
        cost_estimate=pl.CostEstimate(
            flops=flops, transcendentals=transcendentals,
            bytes_accessed=bytes_accessed),
    )
    return kernel(values, keys, query, mask_bias, Wv_blk, Wk_blk, Wq_blk, WoT, Bo)


def reference(values, keys, query, mask, params):
    """Pure-JAX mirror of the PyTorch forward (for verification)."""
    wv, wk, wq, wo, bo = params
    N, Lv, E = values.shape
    Lk, Lq = keys.shape[1], query.shape[1]
    v = values.reshape(N, Lv, HEADS, HEAD_DIM)
    k = keys.reshape(N, Lk, HEADS, HEAD_DIM)
    q = query.reshape(N, Lq, HEADS, HEAD_DIM)
    v = jnp.einsum('nlhd,ed->nlhe', v, wv)
    k = jnp.einsum('nlhd,ed->nlhe', k, wk)
    q = jnp.einsum('nlhd,ed->nlhe', q, wq)
    energy = jnp.einsum('nqhd,nkhd->nhqk', q, k)
    energy = jnp.where(mask == 0, -1e20, energy)
    att = jax.nn.softmax(energy / (E ** 0.5), axis=3)
    out = jnp.einsum('nhql,nlhd->nqhd', att, v).reshape(N, Lq, E)
    return out @ wo.T + bo


if __name__ == "__main__":
    key = jax.random.PRNGKey(0)
    (k_v, k_k, k_q, k_m,
     k_wv, k_wk, k_wq, k_wo, k_bo) = jax.random.split(key, 9)

    N, LQ, LKV = 2, 8, 16
    values = jax.random.normal(k_v, (N, LKV, EMBED_SIZE), jnp.float32)
    keys_in = jax.random.normal(k_k, (N, LKV, EMBED_SIZE), jnp.float32)
    query = jax.random.normal(k_q, (N, LQ, EMBED_SIZE), jnp.float32)

    # Shared (Lq, Lk) 0/1 mask (like the module's global mask); keep at least
    # one unmasked key per query row so softmax rows are well-defined.
    mask = (jax.random.uniform(k_m, (LQ, LKV)) > 0.3).astype(jnp.float32)
    mask = mask.at[:, 0].set(1.0)

    wv = jax.random.normal(k_wv, (HEAD_DIM, HEAD_DIM), jnp.float32) * 0.05
    wk = jax.random.normal(k_wk, (HEAD_DIM, HEAD_DIM), jnp.float32) * 0.05
    wq = jax.random.normal(k_wq, (HEAD_DIM, HEAD_DIM), jnp.float32) * 0.05
    wo = jax.random.normal(k_wo, (EMBED_SIZE, EMBED_SIZE), jnp.float32) * 0.05
    bo = jax.random.normal(k_bo, (EMBED_SIZE,), jnp.float32) * 0.05
    params = (wv, wk, wq, wo, bo)

    ref = jax.block_until_ready(reference(values, keys_in, query, mask, params))

    # precise path: f32 MXU operands + exact reciprocal
    out_exact = jax.block_until_ready(
        custom_attention(values, keys_in, query, mask, params, precise=True))
    assert out_exact.shape == (N, LQ, EMBED_SIZE)
    assert jnp.allclose(out_exact, ref, atol=1e-4, rtol=1e-4), \
        "precise-path mismatch vs JAX reference"

    # fast path: bf16 MXU operands, f32 accumulation/softmax, approx reciprocal
    out_fast = jax.block_until_ready(
        custom_attention(values, keys_in, query, mask, params))
    assert out_fast.shape == (N, LQ, EMBED_SIZE)
    assert jnp.allclose(out_fast, ref, atol=2e-2, rtol=2e-2), \
        "fast-path mismatch vs JAX reference"

    print("KERNEL_OK")
</pallas_src>

<mosaic_0001>
module attributes {stable_mosaic.version = 11 : i64} {
  func.func @attention_kernel(%arg0: i32, %arg1: memref<1x16x256xf32, #tpu.memory_space<vmem>>, %arg2: memref<1x16x256xf32, #tpu.memory_space<vmem>>, %arg3: memref<1x8x256xf32, #tpu.memory_space<vmem>>, %arg4: memref<8x16xf32, #tpu.memory_space<vmem>>, %arg5: memref<256x256xf32, #tpu.memory_space<vmem>>, %arg6: memref<256x256xf32, #tpu.memory_space<vmem>>, %arg7: memref<256x256xf32, #tpu.memory_space<vmem>>, %arg8: memref<256x256xf32, #tpu.memory_space<vmem>>, %arg9: memref<1x256xf32, #tpu.memory_space<vmem>>, %arg10: memref<1x8x256xf32, #tpu.memory_space<vmem>>) attributes {dimension_semantics = [#tpu.dimension_semantics<parallel>], iteration_bounds = array<i64: 2>, scalar_prefetch = 0 : i64, scratch_operands = 0 : i64, tpu.core_type = #tpu.core_type<tc>, window_params = [{transform_indices = @transform_0, window_bounds = array<i64: 1, 16, 256>}, {transform_indices = @transform_1, window_bounds = array<i64: 1, 16, 256>}, {transform_indices = @transform_2, window_bounds = array<i64: 1, 8, 256>}, {pipeline_mode = #tpu.pipeline_mode<synchronous>, transform_indices = @transform_3, window_bounds = array<i64: 8, 16>}, {pipeline_mode = #tpu.pipeline_mode<synchronous>, transform_indices = @transform_4, window_bounds = array<i64: 256, 256>}, {pipeline_mode = #tpu.pipeline_mode<synchronous>, transform_indices = @transform_5, window_bounds = array<i64: 256, 256>}, {pipeline_mode = #tpu.pipeline_mode<synchronous>, transform_indices = @transform_6, window_bounds = array<i64: 256, 256>}, {pipeline_mode = #tpu.pipeline_mode<synchronous>, transform_indices = @transform_7, window_bounds = array<i64: 256, 256>}, {pipeline_mode = #tpu.pipeline_mode<synchronous>, transform_indices = @transform_8, window_bounds = array<i64: 1, 256>}, {transform_indices = @transform_9, window_bounds = array<i64: 1, 8, 256>}]} {
    %c0 = arith.constant 0 : index
    %c0_0 = arith.constant 0 : index
    %c0_1 = arith.constant 0 : index
    %0 = vector.load %arg1[%c0, %c0_0, %c0_1] : memref<1x16x256xf32, #tpu.memory_space<vmem>>, vector<1x16x256xf32>
    %1 = vector.shape_cast %0 : vector<1x16x256xf32> to vector<16x256xf32>
    %c0_2 = arith.constant 0 : index
    %c0_3 = arith.constant 0 : index
    %c0_4 = arith.constant 0 : index
    %2 = vector.load %arg2[%c0_2, %c0_3, %c0_4] : memref<1x16x256xf32, #tpu.memory_space<vmem>>, vector<1x16x256xf32>
    %3 = vector.shape_cast %2 : vector<1x16x256xf32> to vector<16x256xf32>
    %c0_5 = arith.constant 0 : index
    %c0_6 = arith.constant 0 : index
    %c0_7 = arith.constant 0 : index
    %4 = vector.load %arg3[%c0_5, %c0_6, %c0_7] : memref<1x8x256xf32, #tpu.memory_space<vmem>>, vector<1x8x256xf32>
    %5 = vector.shape_cast %4 : vector<1x8x256xf32> to vector<8x256xf32>
    %c0_8 = arith.constant 0 : index
    %c0_9 = arith.constant 0 : index
    %6 = vector.load %arg5[%c0_8, %c0_9] : memref<256x256xf32, #tpu.memory_space<vmem>>, vector<256x256xf32>
    %cst = arith.constant dense<0.000000e+00> : vector<16x256xf32>
    %7 = tpu.matmul %1, %6, %cst {dimension_numbers = #tpu.dot_dimension_numbers<[1], [0], [0], [1], [0, 0, 1, 1], [], []>} : vector<16x256xf32>, vector<256x256xf32>, vector<16x256xf32> -> vector<16x256xf32>
    %c0_10 = arith.constant 0 : index
    %c0_11 = arith.constant 0 : index
    %8 = vector.load %arg6[%c0_10, %c0_11] : memref<256x256xf32, #tpu.memory_space<vmem>>, vector<256x256xf32>
    %cst_12 = arith.constant dense<0.000000e+00> : vector<16x256xf32>
    %9 = tpu.matmul %3, %8, %cst_12 {dimension_numbers = #tpu.dot_dimension_numbers<[1], [0], [0], [1], [0, 0, 1, 1], [], []>} : vector<16x256xf32>, vector<256x256xf32>, vector<16x256xf32> -> vector<16x256xf32>
    %c0_13 = arith.constant 0 : index
    %c0_14 = arith.constant 0 : index
    %10 = vector.load %arg7[%c0_13, %c0_14] : memref<256x256xf32, #tpu.memory_space<vmem>>, vector<256x256xf32>
    %cst_15 = arith.constant dense<0.000000e+00> : vector<8x256xf32>
    %11 = tpu.matmul %5, %10, %cst_15 {dimension_numbers = #tpu.dot_dimension_numbers<[1], [0], [0], [1], [0, 0, 1, 1], [], []>} : vector<8x256xf32>, vector<256x256xf32>, vector<8x256xf32> -> vector<8x256xf32>
    %12 = vector.shape_cast %7 : vector<16x256xf32> to vector<1x16x256xf32>
    %13 = vector.shape_cast %9 : vector<16x256xf32> to vector<1x16x256xf32>
    %14 = vector.shape_cast %11 : vector<8x256xf32> to vector<1x8x256xf32>
    %c0_16 = arith.constant 0 : index
    %c0_17 = arith.constant 0 : index
    %15 = vector.load %arg4[%c0_16, %c0_17] : memref<8x16xf32, #tpu.memory_space<vmem>>, vector<8x16xf32>
    %16 = vector.shape_cast %15 : vector<8x16xf32> to vector<1x8x16xf32>
    %17 = vector.extract_strided_slice %14 {offsets = [0, 0, 0], sizes = [1, 8, 32], strides = [1, 1, 1]} : vector<1x8x256xf32> to vector<1x8x32xf32>
    %18 = vector.extract_strided_slice %13 {offsets = [0, 0, 0], sizes = [1, 16, 32], strides = [1, 1, 1]} : vector<1x16x256xf32> to vector<1x16x32xf32>
    %19 = vector.extract_strided_slice %12 {offsets = [0, 0, 0], sizes = [1, 16, 32], strides = [1, 1, 1]} : vector<1x16x256xf32> to vector<1x16x32xf32>
    %cst_18 = arith.constant dense<0.000000e+00> : vector<1x8x16xf32>
    %20 = tpu.matmul %17, %18, %cst_18 {dimension_numbers = #tpu.dot_dimension_numbers<[2], [2], [1], [1], [0, 0, 0, 1, 1, 1], [0], [0]>} : vector<1x8x32xf32>, vector<1x16x32xf32>, vector<1x8x16xf32> -> vector<1x8x16xf32>
    %21 = arith.addf %20, %16 : vector<1x8x16xf32>
    %cst_19 = arith.constant dense<0xFF800000> : vector<1x8xf32>
    %22 = vector.multi_reduction <maximumf>, %21, %cst_19 [2] : vector<1x8x16xf32> to vector<1x8xf32>
    %23 = vector.shape_cast %22 : vector<1x8xf32> to vector<1x8x1xf32>
    %24 = vector.broadcast %23 : vector<1x8x1xf32> to vector<1x8x16xf32>
    %25 = arith.subf %21, %24 : vector<1x8x16xf32>
    %26 = math.exp %25 : vector<1x8x16xf32>
    %cst_20 = arith.constant dense<0.000000e+00> : vector<1x8xf32>
    %27 = vector.multi_reduction <add>, %26, %cst_20 [2] : vector<1x8x16xf32> to vector<1x8xf32>
    %28 = vector.shape_cast %27 : vector<1x8xf32> to vector<1x8x1xf32>
    %29 = tpu.reciprocal %28 : vector<1x8x1xf32> -> vector<1x8x1xf32>
    %30 = vector.broadcast %29 : vector<1x8x1xf32> to vector<1x8x16xf32>
    %31 = arith.mulf %26, %30 : vector<1x8x16xf32>
    %cst_21 = arith.constant dense<0.000000e+00> : vector<1x8x32xf32>
    %32 = tpu.matmul %31, %19, %cst_21 {dimension_numbers = #tpu.dot_dimension_numbers<[2], [1], [1], [2], [0, 0, 0, 1, 1, 2], [0], [0]>} : vector<1x8x16xf32>, vector<1x16x32xf32>, vector<1x8x32xf32> -> vector<1x8x32xf32>
    %33 = vector.extract_strided_slice %14 {offsets = [0, 0, 32], sizes = [1, 8, 32], strides = [1, 1, 1]} : vector<1x8x256xf32> to vector<1x8x32xf32>
    %34 = vector.extract_strided_slice %13 {offsets = [0, 0, 32], sizes = [1, 16, 32], strides = [1, 1, 1]} : vector<1x16x256xf32> to vector<1x16x32xf32>
    %35 = vector.extract_strided_slice %12 {offsets = [0, 0, 32], sizes = [1, 16, 32], strides = [1, 1, 1]} : vector<1x16x256xf32> to vector<1x16x32xf32>
    %cst_22 = arith.constant dense<0.000000e+00> : vector<1x8x16xf32>
    %36 = tpu.matmul %33, %34, %cst_22 {dimension_numbers = #tpu.dot_dimension_numbers<[2], [2], [1], [1], [0, 0, 0, 1, 1, 1], [0], [0]>} : vector<1x8x32xf32>, vector<1x16x32xf32>, vector<1x8x16xf32> -> vector<1x8x16xf32>
    %37 = arith.addf %36, %16 : vector<1x8x16xf32>
    %cst_23 = arith.constant dense<0xFF800000> : vector<1x8xf32>
    %38 = vector.multi_reduction <maximumf>, %37, %cst_23 [2] : vector<1x8x16xf32> to vector<1x8xf32>
    %39 = vector.shape_cast %38 : vector<1x8xf32> to vector<1x8x1xf32>
    %40 = vector.broadcast %39 : vector<1x8x1xf32> to vector<1x8x16xf32>
    %41 = arith.subf %37, %40 : vector<1x8x16xf32>
    %42 = math.exp %41 : vector<1x8x16xf32>
    %cst_24 = arith.constant dense<0.000000e+00> : vector<1x8xf32>
    %43 = vector.multi_reduction <add>, %42, %cst_24 [2] : vector<1x8x16xf32> to vector<1x8xf32>
    %44 = vector.shape_cast %43 : vector<1x8xf32> to vector<1x8x1xf32>
    %45 = tpu.reciprocal %44 : vector<1x8x1xf32> -> vector<1x8x1xf32>
    %46 = vector.broadcast %45 : vector<1x8x1xf32> to vector<1x8x16xf32>
    %47 = arith.mulf %42, %46 : vector<1x8x16xf32>
    %cst_25 = arith.constant dense<0.000000e+00> : vector<1x8x32xf32>
    %48 = tpu.matmul %47, %35, %cst_25 {dimension_numbers = #tpu.dot_dimension_numbers<[2], [1], [1], [2], [0, 0, 0, 1, 1, 2], [0], [0]>} : vector<1x8x16xf32>, vector<1x16x32xf32>, vector<1x8x32xf32> -> vector<1x8x32xf32>
    %49 = vector.extract_strided_slice %14 {offsets = [0, 0, 64], sizes = [1, 8, 32], strides = [1, 1, 1]} : vector<1x8x256xf32> to vector<1x8x32xf32>
    %50 = vector.extract_strided_slice %13 {offsets = [0, 0, 64], sizes = [1, 16, 32], strides = [1, 1, 1]} : vector<1x16x256xf32> to vector<1x16x32xf32>
    %51 = vector.extract_strided_slice %12 {offsets = [0, 0, 64], sizes = [1, 16, 32], strides = [1, 1, 1]} : vector<1x16x256xf32> to vector<1x16x32xf32>
    %cst_26 = arith.constant dense<0.000000e+00> : vector<1x8x16xf32>
    %52 = tpu.matmul %49, %50, %cst_26 {dimension_numbers = #tpu.dot_dimension_numbers<[2], [2], [1], [1], [0, 0, 0, 1, 1, 1], [0], [0]>} : vector<1x8x32xf32>, vector<1x16x32xf32>, vector<1x8x16xf32> -> vector<1x8x16xf32>
    %53 = arith.addf %52, %16 : vector<1x8x16xf32>
    %cst_27 = arith.constant dense<0xFF800000> : vector<1x8xf32>
    %54 = vector.multi_reduction <maximumf>, %53, %cst_27 [2] : vector<1x8x16xf32> to vector<1x8xf32>
    %55 = vector.shape_cast %54 : vector<1x8xf32> to vector<1x8x1xf32>
    %56 = vector.broadcast %55 : vector<1x8x1xf32> to vector<1x8x16xf32>
    %57 = arith.subf %53, %56 : vector<1x8x16xf32>
    %58 = math.exp %57 : vector<1x8x16xf32>
    %cst_28 = arith.constant dense<0.000000e+00> : vector<1x8xf32>
    %59 = vector.multi_reduction <add>, %58, %cst_28 [2] : vector<1x8x16xf32> to vector<1x8xf32>
    %60 = vector.shape_cast %59 : vector<1x8xf32> to vector<1x8x1xf32>
    %61 = tpu.reciprocal %60 : vector<1x8x1xf32> -> vector<1x8x1xf32>
    %62 = vector.broadcast %61 : vector<1x8x1xf32> to vector<1x8x16xf32>
    %63 = arith.mulf %58, %62 : vector<1x8x16xf32>
    %cst_29 = arith.constant dense<0.000000e+00> : vector<1x8x32xf32>
    %64 = tpu.matmul %63, %51, %cst_29 {dimension_numbers = #tpu.dot_dimension_numbers<[2], [1], [1], [2], [0, 0, 0, 1, 1, 2], [0], [0]>} : vector<1x8x16xf32>, vector<1x16x32xf32>, vector<1x8x32xf32> -> vector<1x8x32xf32>
    %65 = vector.extract_strided_slice %14 {offsets = [0, 0, 96], sizes = [1, 8, 32], strides = [1, 1, 1]} : vector<1x8x256xf32> to vector<1x8x32xf32>
    %66 = vector.extract_strided_slice %13 {offsets = [0, 0, 96], sizes = [1, 16, 32], strides = [1, 1, 1]} : vector<1x16x256xf32> to vector<1x16x32xf32>
    %67 = vector.extract_strided_slice %12 {offsets = [0, 0, 96], sizes = [1, 16, 32], strides = [1, 1, 1]} : vector<1x16x256xf32> to vector<1x16x32xf32>
    %cst_30 = arith.constant dense<0.000000e+00> : vector<1x8x16xf32>
    %68 = tpu.matmul %65, %66, %cst_30 {dimension_numbers = #tpu.dot_dimension_numbers<[2], [2], [1], [1], [0, 0, 0, 1, 1, 1], [0], [0]>} : vector<1x8x32xf32>, vector<1x16x32xf32>, vector<1x8x16xf32> -> vector<1x8x16xf32>
    %69 = arith.addf %68, %16 : vector<1x8x16xf32>
    %cst_31 = arith.constant dense<0xFF800000> : vector<1x8xf32>
    %70 = vector.multi_reduction <maximumf>, %69, %cst_31 [2] : vector<1x8x16xf32> to vector<1x8xf32>
    %71 = vector.shape_cast %70 : vector<1x8xf32> to vector<1x8x1xf32>
    %72 = vector.broadcast %71 : vector<1x8x1xf32> to vector<1x8x16xf32>
    %73 = arith.subf %69, %72 : vector<1x8x16xf32>
    %74 = math.exp %73 : vector<1x8x16xf32>
    %cst_32 = arith.constant dense<0.000000e+00> : vector<1x8xf32>
    %75 = vector.multi_reduction <add>, %74, %cst_32 [2] : vector<1x8x16xf32> to vector<1x8xf32>
    %76 = vector.shape_cast %75 : vector<1x8xf32> to vector<1x8x1xf32>
    %77 = tpu.reciprocal %76 : vector<1x8x1xf32> -> vector<1x8x1xf32>
    %78 = vector.broadcast %77 : vector<1x8x1xf32> to vector<1x8x16xf32>
    %79 = arith.mulf %74, %78 : vector<1x8x16xf32>
    %cst_33 = arith.constant dense<0.000000e+00> : vector<1x8x32xf32>
    %80 = tpu.matmul %79, %67, %cst_33 {dimension_numbers = #tpu.dot_dimension_numbers<[2], [1], [1], [2], [0, 0, 0, 1, 1, 2], [0], [0]>} : vector<1x8x16xf32>, vector<1x16x32xf32>, vector<1x8x32xf32> -> vector<1x8x32xf32>
    %81 = vector.extract_strided_slice %14 {offsets = [0, 0, 128], sizes = [1, 8, 32], strides = [1, 1, 1]} : vector<1x8x256xf32> to vector<1x8x32xf32>
    %82 = vector.extract_strided_slice %13 {offsets = [0, 0, 128], sizes = [1, 16, 32], strides = [1, 1, 1]} : vector<1x16x256xf32> to vector<1x16x32xf32>
    %83 = vector.extract_strided_slice %12 {offsets = [0, 0, 128], sizes = [1, 16, 32], strides = [1, 1, 1]} : vector<1x16x256xf32> to vector<1x16x32xf32>
    %cst_34 = arith.constant dense<0.000000e+00> : vector<1x8x16xf32>
    %84 = tpu.matmul %81, %82, %cst_34 {dimension_numbers = #tpu.dot_dimension_numbers<[2], [2], [1], [1], [0, 0, 0, 1, 1, 1], [0], [0]>} : vector<1x8x32xf32>, vector<1x16x32xf32>, vector<1x8x16xf32> -> vector<1x8x16xf32>
    %85 = arith.addf %84, %16 : vector<1x8x16xf32>
    %cst_35 = arith.constant dense<0xFF800000> : vector<1x8xf32>
    %86 = vector.multi_reduction <maximumf>, %85, %cst_35 [2] : vector<1x8x16xf32> to vector<1x8xf32>
    %87 = vector.shape_cast %86 : vector<1x8xf32> to vector<1x8x1xf32>
    %88 = vector.broadcast %87 : vector<1x8x1xf32> to vector<1x8x16xf32>
    %89 = arith.subf %85, %88 : vector<1x8x16xf32>
    %90 = math.exp %89 : vector<1x8x16xf32>
    %cst_36 = arith.constant dense<0.000000e+00> : vector<1x8xf32>
    %91 = vector.multi_reduction <add>, %90, %cst_36 [2] : vector<1x8x16xf32> to vector<1x8xf32>
    %92 = vector.shape_cast %91 : vector<1x8xf32> to vector<1x8x1xf32>
    %93 = tpu.reciprocal %92 : vector<1x8x1xf32> -> vector<1x8x1xf32>
    %94 = vector.broadcast %93 : vector<1x8x1xf32> to vector<1x8x16xf32>
    %95 = arith.mulf %90, %94 : vector<1x8x16xf32>
    %cst_37 = arith.constant dense<0.000000e+00> : vector<1x8x32xf32>
    %96 = tpu.matmul %95, %83, %cst_37 {dimension_numbers = #tpu.dot_dimension_numbers<[2], [1], [1], [2], [0, 0, 0, 1, 1, 2], [0], [0]>} : vector<1x8x16xf32>, vector<1x16x32xf32>, vector<1x8x32xf32> -> vector<1x8x32xf32>
    %97 = vector.extract_strided_slice %14 {offsets = [0, 0, 160], sizes = [1, 8, 32], strides = [1, 1, 1]} : vector<1x8x256xf32> to vector<1x8x32xf32>
    %98 = vector.extract_strided_slice %13 {offsets = [0, 0, 160], sizes = [1, 16, 32], strides = [1, 1, 1]} : vector<1x16x256xf32> to vector<1x16x32xf32>
    %99 = vector.extract_strided_slice %12 {offsets = [0, 0, 160], sizes = [1, 16, 32], strides = [1, 1, 1]} : vector<1x16x256xf32> to vector<1x16x32xf32>
    %cst_38 = arith.constant dense<0.000000e+00> : vector<1x8x16xf32>
    %100 = tpu.matmul %97, %98, %cst_38 {dimension_numbers = #tpu.dot_dimension_numbers<[2], [2], [1], [1], [0, 0, 0, 1, 1, 1], [0], [0]>} : vector<1x8x32xf32>, vector<1x16x32xf32>, vector<1x8x16xf32> -> vector<1x8x16xf32>
    %101 = arith.addf %100, %16 : vector<1x8x16xf32>
    %cst_39 = arith.constant dense<0xFF800000> : vector<1x8xf32>
    %102 = vector.multi_reduction <maximumf>, %101, %cst_39 [2] : vector<1x8x16xf32> to vector<1x8xf32>
    %103 = vector.shape_cast %102 : vector<1x8xf32> to vector<1x8x1xf32>
    %104 = vector.broadcast %103 : vector<1x8x1xf32> to vector<1x8x16xf32>
    %105 = arith.subf %101, %104 : vector<1x8x16xf32>
    %106 = math.exp %105 : vector<1x8x16xf32>
    %cst_40 = arith.constant dense<0.000000e+00> : vector<1x8xf32>
    %107 = vector.multi_reduction <add>, %106, %cst_40 [2] : vector<1x8x16xf32> to vector<1x8xf32>
    %108 = vector.shape_cast %107 : vector<1x8xf32> to vector<1x8x1xf32>
    %109 = tpu.reciprocal %108 : vector<1x8x1xf32> -> vector<1x8x1xf32>
    %110 = vector.broadcast %109 : vector<1x8x1xf32> to vector<1x8x16xf32>
    %111 = arith.mulf %106, %110 : vector<1x8x16xf32>
    %cst_41 = arith.constant dense<0.000000e+00> : vector<1x8x32xf32>
    %112 = tpu.matmul %111, %99, %cst_41 {dimension_numbers = #tpu.dot_dimension_numbers<[2], [1], [1], [2], [0, 0, 0, 1, 1, 2], [0], [0]>} : vector<1x8x16xf32>, vector<1x16x32xf32>, vector<1x8x32xf32> -> vector<1x8x32xf32>
    %113 = vector.extract_strided_slice %14 {offsets = [0, 0, 192], sizes = [1, 8, 32], strides = [1, 1, 1]} : vector<1x8x256xf32> to vector<1x8x32xf32>
    %114 = vector.extract_strided_slice %13 {offsets = [0, 0, 192], sizes = [1, 16, 32], strides = [1, 1, 1]} : vector<1x16x256xf32> to vector<1x16x32xf32>
    %115 = vector.extract_strided_slice %12 {offsets = [0, 0, 192], sizes = [1, 16, 32], strides = [1, 1, 1]} : vector<1x16x256xf32> to vector<1x16x32xf32>
    %cst_42 = arith.constant dense<0.000000e+00> : vector<1x8x16xf32>
    %116 = tpu.matmul %113, %114, %cst_42 {dimension_numbers = #tpu.dot_dimension_numbers<[2], [2], [1], [1], [0, 0, 0, 1, 1, 1], [0], [0]>} : vector<1x8x32xf32>, vector<1x16x32xf32>, vector<1x8x16xf32> -> vector<1x8x16xf32>
    %117 = arith.addf %116, %16 : vector<1x8x16xf32>
    %cst_43 = arith.constant dense<0xFF800000> : vector<1x8xf32>
    %118 = vector.multi_reduction <maximumf>, %117, %cst_43 [2] : vector<1x8x16xf32> to vector<1x8xf32>
    %119 = vector.shape_cast %118 : vector<1x8xf32> to vector<1x8x1xf32>
    %120 = vector.broadcast %119 : vector<1x8x1xf32> to vector<1x8x16xf32>
    %121 = arith.subf %117, %120 : vector<1x8x16xf32>
    %122 = math.exp %121 : vector<1x8x16xf32>
    %cst_44 = arith.constant dense<0.000000e+00> : vector<1x8xf32>
    %123 = vector.multi_reduction <add>, %122, %cst_44 [2] : vector<1x8x16xf32> to vector<1x8xf32>
    %124 = vector.shape_cast %123 : vector<1x8xf32> to vector<1x8x1xf32>
    %125 = tpu.reciprocal %124 : vector<1x8x1xf32> -> vector<1x8x1xf32>
    %126 = vector.broadcast %125 : vector<1x8x1xf32> to vector<1x8x16xf32>
    %127 = arith.mulf %122, %126 : vector<1x8x16xf32>
    %cst_45 = arith.constant dense<0.000000e+00> : vector<1x8x32xf32>
    %128 = tpu.matmul %127, %115, %cst_45 {dimension_numbers = #tpu.dot_dimension_numbers<[2], [1], [1], [2], [0, 0, 0, 1, 1, 2], [0], [0]>} : vector<1x8x16xf32>, vector<1x16x32xf32>, vector<1x8x32xf32> -> vector<1x8x32xf32>
    %129 = vector.extract_strided_slice %14 {offsets = [0, 0, 224], sizes = [1, 8, 32], strides = [1, 1, 1]} : vector<1x8x256xf32> to vector<1x8x32xf32>
    %130 = vector.extract_strided_slice %13 {offsets = [0, 0, 224], sizes = [1, 16, 32], strides = [1, 1, 1]} : vector<1x16x256xf32> to vector<1x16x32xf32>
    %131 = vector.extract_strided_slice %12 {offsets = [0, 0, 224], sizes = [1, 16, 32], strides = [1, 1, 1]} : vector<1x16x256xf32> to vector<1x16x32xf32>
    %cst_46 = arith.constant dense<0.000000e+00> : vector<1x8x16xf32>
    %132 = tpu.matmul %129, %130, %cst_46 {dimension_numbers = #tpu.dot_dimension_numbers<[2], [2], [1], [1], [0, 0, 0, 1, 1, 1], [0], [0]>} : vector<1x8x32xf32>, vector<1x16x32xf32>, vector<1x8x16xf32> -> vector<1x8x16xf32>
    %133 = arith.addf %132, %16 : vector<1x8x16xf32>
    %cst_47 = arith.constant dense<0xFF800000> : vector<1x8xf32>
    %134 = vector.multi_reduction <maximumf>, %133, %cst_47 [2] : vector<1x8x16xf32> to vector<1x8xf32>
    %135 = vector.shape_cast %134 : vector<1x8xf32> to vector<1x8x1xf32>
    %136 = vector.broadcast %135 : vector<1x8x1xf32> to vector<1x8x16xf32>
    %137 = arith.subf %133, %136 : vector<1x8x16xf32>
    %138 = math.exp %137 : vector<1x8x16xf32>
    %cst_48 = arith.constant dense<0.000000e+00> : vector<1x8xf32>
    %139 = vector.multi_reduction <add>, %138, %cst_48 [2] : vector<1x8x16xf32> to vector<1x8xf32>
    %140 = vector.shape_cast %139 : vector<1x8xf32> to vector<1x8x1xf32>
    %141 = tpu.reciprocal %140 : vector<1x8x1xf32> -> vector<1x8x1xf32>
    %142 = vector.broadcast %141 : vector<1x8x1xf32> to vector<1x8x16xf32>
    %143 = arith.mulf %138, %142 : vector<1x8x16xf32>
    %cst_49 = arith.constant dense<0.000000e+00> : vector<1x8x32xf32>
    %144 = tpu.matmul %143, %131, %cst_49 {dimension_numbers = #tpu.dot_dimension_numbers<[2], [1], [1], [2], [0, 0, 0, 1, 1, 2], [0], [0]>} : vector<1x8x16xf32>, vector<1x16x32xf32>, vector<1x8x32xf32> -> vector<1x8x32xf32>
    %145 = tpu.concatenate %32, %48, %64, %80, %96, %112, %128, %144 in 2 : vector<1x8x32xf32>, vector<1x8x32xf32>, vector<1x8x32xf32>, vector<1x8x32xf32>, vector<1x8x32xf32>, vector<1x8x32xf32>, vector<1x8x32xf32>, vector<1x8x32xf32> -> vector<1x8x256xf32>
    %146 = vector.shape_cast %145 : vector<1x8x256xf32> to vector<8x256xf32>
    %c0_50 = arith.constant 0 : index
    %c0_51 = arith.constant 0 : index
    %147 = vector.load %arg8[%c0_50, %c0_51] : memref<256x256xf32, #tpu.memory_space<vmem>>, vector<256x256xf32>
    %cst_52 = arith.constant dense<0.000000e+00> : vector<8x256xf32>
    %148 = tpu.matmul %146, %147, %cst_52 {dimension_numbers = #tpu.dot_dimension_numbers<[1], [0], [0], [1], [0, 0, 1, 1], [], []>} : vector<8x256xf32>, vector<256x256xf32>, vector<8x256xf32> -> vector<8x256xf32>
    %c0_53 = arith.constant 0 : index
    %c0_54 = arith.constant 0 : index
    %149 = vector.load %arg9[%c0_53, %c0_54] : memref<1x256xf32, #tpu.memory_space<vmem>>, vector<1x256xf32>
    %150 = vector.broadcast %149 : vector<1x256xf32> to vector<8x256xf32>
    %151 = arith.addf %148, %150 : vector<8x256xf32>
    %152 = vector.shape_cast %151 : vector<8x256xf32> to vector<1x8x256xf32>
    %c0_55 = arith.constant 0 : index
    %c0_56 = arith.constant 0 : index
    %c0_57 = arith.constant 0 : index
    %153 = vector.load %arg10[%c0_55, %c0_56, %c0_57] : memref<1x8x256xf32, #tpu.memory_space<vmem>>, vector<1x8x256xf32>
    tpu.vector_store %arg10[%c0_55, %c0_56, %c0_57], %152 {strides = array<i32>} : memref<1x8x256xf32, #tpu.memory_space<vmem>>, vector<1x8x256xf32>,
    return
  }
  func.func @transform_0(%arg0: i32) -> (i32, i32, i32) {
    %c0_i32 = arith.constant 0 : i32
    %c0_i32_0 = arith.constant 0 : i32
    %c0_i32_1 = arith.constant 0 : i32
    return %arg0, %c0_i32, %c0_i32_0 : i32, i32, i32
  }
  func.func @transform_1(%arg0: i32) -> (i32, i32, i32) {
    %c0_i32 = arith.constant 0 : i32
    %c0_i32_0 = arith.constant 0 : i32
    %c0_i32_1 = arith.constant 0 : i32
    return %arg0, %c0_i32, %c0_i32_0 : i32, i32, i32
  }
  func.func @transform_2(%arg0: i32) -> (i32, i32, i32) {
    %c0_i32 = arith.constant 0 : i32
    %c0_i32_0 = arith.constant 0 : i32
    %c0_i32_1 = arith.constant 0 : i32
    return %arg0, %c0_i32, %c0_i32_0 : i32, i32, i32
  }
  func.func @transform_3(%arg0: i32) -> (i32, i32) {
    %c0_i32 = arith.constant 0 : i32
    %c0_i32_0 = arith.constant 0 : i32
    %c0_i32_1 = arith.constant 0 : i32
    return %c0_i32, %c0_i32_0 : i32, i32
  }
  func.func @transform_4(%arg0: i32) -> (i32, i32) {
    %c0_i32 = arith.constant 0 : i32
    %c0_i32_0 = arith.constant 0 : i32
    %c0_i32_1 = arith.constant 0 : i32
    return %c0_i32, %c0_i32_0 : i32, i32
  }
  func.func @transform_5(%arg0: i32) -> (i32, i32) {
    %c0_i32 = arith.constant 0 : i32
    %c0_i32_0 = arith.constant 0 : i32
    %c0_i32_1 = arith.constant 0 : i32
    return %c0_i32, %c0_i32_0 : i32, i32
  }
  func.func @transform_6(%arg0: i32) -> (i32, i32) {
    %c0_i32 = arith.constant 0 : i32
    %c0_i32_0 = arith.constant 0 : i32
    %c0_i32_1 = arith.constant 0 : i32
    return %c0_i32, %c0_i32_0 : i32, i32
  }
  func.func @transform_7(%arg0: i32) -> (i32, i32) {
    %c0_i32 = arith.constant 0 : i32
    %c0_i32_0 = arith.constant 0 : i32
    %c0_i32_1 = arith.constant 0 : i32
    return %c0_i32, %c0_i32_0 : i32, i32
  }
  func.func @transform_8(%arg0: i32) -> (i32, i32) {
    %c0_i32 = arith.constant 0 : i32
    %c0_i32_0 = arith.constant 0 : i32
    %c0_i32_1 = arith.constant 0 : i32
    return %c0_i32, %c0_i32_0 : i32, i32
  }
  func.func @transform_9(%arg0: i32) -> (i32, i32, i32) {
    %c0_i32 = arith.constant 0 : i32
    %c0_i32_0 = arith.constant 0 : i32
    %c0_i32_1 = arith.constant 0 : i32
    return %arg0, %c0_i32, %c0_i32_0 : i32, i32, i32
  }
}

</mosaic_0001>

<llo_original>
// kernel: tpu_custom_call.1
$region0: #{tpu_custom_call.1}
  #allocation0 [shape = 'u32[]', space=smem, size = 0x4, offset = 0x4, fixed_abs, tag = 'smem constant byte address 0x4 - core index']
  #allocation1 [shape = 'u32[144,128]{1,0:T(1,128)}', space=vmem, size = 0x12000, scoped, tag = 'internal scratch']
  %s0 = inlined_call_operand.hbm [shape: f32[2,16,256], index: 0, kind: input, shape index: {}]
  %s1 = inlined_call_operand.hbm [shape: f32[2,16,256], index: 1, kind: input, shape index: {}]
  %s2 = inlined_call_operand.hbm [shape: f32[2,8,256], index: 2, kind: input, shape index: {}]
  %s3 = inlined_call_operand.vmem [shape: f32[8,16], index: 3, kind: input, shape index: {}]
  %s4 = inlined_call_operand.hbm [shape: f32[256,256], index: 4, kind: input, shape index: {}]
  %s5 = inlined_call_operand.hbm [shape: f32[256,256], index: 5, kind: input, shape index: {}]
  %s6 = inlined_call_operand.hbm [shape: f32[256,256], index: 6, kind: input, shape index: {}]
  %s7 = inlined_call_operand.hbm [shape: f32[256,256], index: 7, kind: input, shape index: {}]
  %s8 = inlined_call_operand.vmem [shape: f32[1,256], index: 8, kind: input, shape index: {}]
  %s9 = inlined_call_operand.hbm [shape: f32[2,8,256], index: 9, kind: output, shape index: {}]
  %s10 = sld [smem:[#allocation0]]
  $region97: #{tpu_custom_call.1} parent=0
    _
  %s12 = ssub.s32 1, %s10
  %s13 = scalar_select 0, %s12, %s10
  $region1: #{tpu_custom_call.1} parent=0
    #allocation2 [shape = 'u8[32768]{0}', space=vmem, size = 0x8000, scoped, tag = 'input window, operand 0']
    #allocation3 [shape = 's32[2]{0}', space=sflag, size = 0x8, scoped, tag = 'scoped memory for tpu_custom_call.1']
    #allocation4 [shape = 's32[2]{0}', space=sflag, size = 0x8, scoped, tag = 'scoped memory for tpu_custom_call.1']
    #allocation5 [shape = 'u8[32768]{0}', space=vmem, size = 0x8000, scoped, tag = 'input window, operand 1']
    #allocation6 [shape = 's32[2]{0}', space=sflag, size = 0x8, scoped, tag = 'scoped memory for tpu_custom_call.1']
    #allocation7 [shape = 'u8[16384]{0}', space=vmem, size = 0x4000, scoped, tag = 'input window, operand 2']
    #allocation8 [shape = 'u8[262144]{0}', space=vmem, size = 0x40000, scoped, tag = 'input window, operand 4, single buffered']
    #allocation9 [shape = 's32[1]{0}', space=sflag, size = 0x4, scoped, tag = 'scoped memory for tpu_custom_call.1']
    #allocation10 [shape = 'u8[262144]{0}', space=vmem, size = 0x40000, scoped, tag = 'input window, operand 5, single buffered']
    #allocation11 [shape = 'u8[262144]{0}', space=vmem, size = 0x40000, scoped, tag = 'input window, operand 6, single buffered']
    #allocation12 [shape = 's32[1]{0}', space=sflag, size = 0x4, scoped, tag = 'scoped memory for tpu_custom_call.1']
    #allocation13 [shape = 'u8[262144]{0}', space=vmem, size = 0x40000, scoped, tag = 'input window, operand 7, single buffered']
    #allocation14 [shape = 'u8[16384]{0}', space=vmem, size = 0x4000, scoped, tag = 'output window, operand 0']
    %14 = vsyncpa [#allocation3], 0
    %s15 = scalar_lea.sflag [#allocation3], 1
    %16 = vsyncpa %s15, 0
    %17 = vsyncpa [#allocation6], 0
    %s18 = scalar_lea.sflag [#allocation6], 1
    %19 = vsyncpa %s18, 0
    %20 = vsyncpa [#allocation9], 0
    %21 = vsyncpa [#allocation12], 0
    %22 = vsyncpa [#allocation4], 0
    %s23 = scalar_lea.sflag [#allocation4], 1
    %24 = vsyncpa %s23, 0
    loop: start=0, step=1, limit=4
    $region2: #{tpu_custom_call.1} parent=1 // loop_pre_header
      _
    $region3: #{tpu_custom_call.1} parent=1 // loop_header
      %s26 = sphi 0, %s30
      %p27 = scmp.ge.s32.totalorder %s26, 4
      %s36 = sphi 0, %s38
      %s39 = sphi 0, %s36
      %s40 = sphi 0, %s39
      %s56 = sphi 0, %s40
      %s62 = sphi 0, %s64
      %s65 = sphi 0, %s62
      %s66 = sphi 0, %s65
      %s82 = sphi 0, %s66
      %s88 = sphi 0, %s90
      %s91 = sphi 0, %s88
      %s92 = sphi 0, %s91
      %s108 = sphi 0, %s92
      %s112 = sphi 0, %s112
      %s114 = sphi 0, %s112
      %s115 = sphi 0, %s114
      %s129 = sphi 0, %s115
      %s133 = sphi 0, %s133
      %s135 = sphi 0, %s133
      %s136 = sphi 0, %s135
      %s150 = sphi 0, %s136
      %s154 = sphi 0, %s154
      %s156 = sphi 0, %s154
      %s157 = sphi 0, %s156
      %s171 = sphi 0, %s157
      %s175 = sphi 0, %s175
      %s177 = sphi 0, %s175
      %s178 = sphi 0, %s177
      %s192 = sphi 0, %s178
      %s196 = sphi 0, %s196
      %s198 = sphi 0, %s196
      %s199 = sphi 0, %s198
      %s213 = sphi 0, %s199
      %s217 = sphi 0, %s217
      %s219 = sphi 0, %s217
      %s220 = sphi 0, %s219
      %s234 = sphi 0, %s220
      %s240 = sphi 0, %s242
      %s243 = sphi 0, %s240
      %s244 = sphi 0, %s243
      %s260 = sphi 0, %s244
    $region4: #{tpu_custom_call.1} parent=1 // loop_header_branch
      %29 = sbr.rel (%p27) target = $region8
    $region5: #{tpu_custom_call.1} parent=1 // loop_body
      %s31 = ssub.s32 %s26, 1
      %s32 = ssub.s32 %s26, 2
      %s33 = sadd.s32 %s26, 1
      %s34 = ssub.s32 %s26, %s33
      %p35 = scmp.eq.s32.totalorder %s34, 0
      %s37 = sadd.s32 %s36, 1
      %s38 = scalar_select %p35, %s36, %s37
      %p41 = pneg %p35
      %p42 = scmp.eq.s32.totalorder %s26, 1
      %p43 = por %p41, %p42
      %p44 = scmp.ne.s32.totalorder %s36, %s39
      %p45 = scmp.eq.s32.totalorder %s26, 0
      %p46 = por %p44, %p45
      %p47 = scmp.ne.s32.totalorder %s36, %s39
      %p48 = scmp.eq.s32.totalorder %s31, 1
      %p49 = por %p47, %p48
      %p50 = scmp.ne.s32.totalorder %s39, %s40
      %p51 = scmp.eq.s32.totalorder %s31, 0
      %p52 = por %p50, %p51
      %p53 = scmp.ne.s32.totalorder %s39, %s40
      %p54 = scmp.eq.s32.totalorder %s32, 1
      %p55 = por %p53, %p54
      %p57 = scmp.ne.s32.totalorder %s40, %s56
      %p58 = scmp.eq.s32.totalorder %s32, 0
      %p59 = por %p57, %p58
      %s60 = ssub.s32 %s26, %s33
      %p61 = scmp.eq.s32.totalorder %s60, 0
      %s63 = sadd.s32 %s62, 1
      %s64 = scalar_select %p61, %s62, %s63
      %p67 = pneg %p61
      %p68 = scmp.eq.s32.totalorder %s26, 1
      %p69 = por %p67, %p68
      %p70 = scmp.ne.s32.totalorder %s62, %s65
      %p71 = scmp.eq.s32.totalorder %s26, 0
      %p72 = por %p70, %p71
      %p73 = scmp.ne.s32.totalorder %s62, %s65
      %p74 = scmp.eq.s32.totalorder %s31, 1
      %p75 = por %p73, %p74
      %p76 = scmp.ne.s32.totalorder %s65, %s66
      %p77 = scmp.eq.s32.totalorder %s31, 0
      %p78 = por %p76, %p77
      %p79 = scmp.ne.s32.totalorder %s65, %s66
      %p80 = scmp.eq.s32.totalorder %s32, 1
      %p81 = por %p79, %p80
      %p83 = scmp.ne.s32.totalorder %s66, %s82
      %p84 = scmp.eq.s32.totalorder %s32, 0
      %p85 = por %p83, %p84
      %s86 = ssub.s32 %s26, %s33
      %p87 = scmp.eq.s32.totalorder %s86, 0
      %s89 = sadd.s32 %s88, 1
      %s90 = scalar_select %p87, %s88, %s89
      %p93 = pneg %p87
      %p94 = scmp.eq.s32.totalorder %s26, 1
      %p95 = por %p93, %p94
      %p96 = scmp.ne.s32.totalorder %s88, %s91
      %p97 = scmp.eq.s32.totalorder %s26, 0
      %p98 = por %p96, %p97
      %p99 = scmp.ne.s32.totalorder %s88, %s91
      %p100 = scmp.eq.s32.totalorder %s31, 1
      %p101 = por %p99, %p100
      %p102 = scmp.ne.s32.totalorder %s91, %s92
      %p103 = scmp.eq.s32.totalorder %s31, 0
      %p104 = por %p102, %p103
      %p105 = scmp.ne.s32.totalorder %s91, %s92
      %p106 = scmp.eq.s32.totalorder %s32, 1
      %p107 = por %p105, %p106
      %p109 = scmp.ne.s32.totalorder %s92, %s108
      %p110 = scmp.eq.s32.totalorder %s32, 0
      %p111 = por %p109, %p110
      %s113 = sadd.s32 %s112, 1
      %p116 = scmp.eq.s32.totalorder %s26, 1
      %p117 = scmp.ne.s32.totalorder %s112, %s114
      %p118 = scmp.eq.s32.totalorder %s26, 0
      %p119 = por %p117, %p118
      %p120 = scmp.ne.s32.totalorder %s112, %s114
      %p121 = scmp.eq.s32.totalorder %s31, 1
      %p122 = por %p120, %p121
      %p123 = scmp.ne.s32.totalorder %s114, %s115
      %p124 = scmp.eq.s32.totalorder %s31, 0
      %p125 = por %p123, %p124
      %p126 = scmp.ne.s32.totalorder %s114, %s115
      %p127 = scmp.eq.s32.totalorder %s32, 1
      %p128 = por %p126, %p127
      %p130 = scmp.ne.s32.totalorder %s115, %s129
      %p131 = scmp.eq.s32.totalorder %s32, 0
      %p132 = por %p130, %p131
      %s134 = sadd.s32 %s133, 1
      %p137 = scmp.eq.s32.totalorder %s26, 1
      %p138 = scmp.ne.s32.totalorder %s133, %s135
      %p139 = scmp.eq.s32.totalorder %s26, 0
      %p140 = por %p138, %p139
      %p141 = scmp.ne.s32.totalorder %s133, %s135
      %p142 = scmp.eq.s32.totalorder %s31, 1
      %p143 = por %p141, %p142
      %p144 = scmp.ne.s32.totalorder %s135, %s136
      %p145 = scmp.eq.s32.totalorder %s31, 0
      %p146 = por %p144, %p145
      %p147 = scmp.ne.s32.totalorder %s135, %s136
      %p148 = scmp.eq.s32.totalorder %s32, 1
      %p149 = por %p147, %p148
      %p151 = scmp.ne.s32.totalorder %s136, %s150
      %p152 = scmp.eq.s32.totalorder %s32, 0
      %p153 = por %p151, %p152
      %s155 = sadd.s32 %s154, 1
      %p158 = scmp.eq.s32.totalorder %s26, 1
      %p159 = scmp.ne.s32.totalorder %s154, %s156
      %p160 = scmp.eq.s32.totalorder %s26, 0
      %p161 = por %p159, %p160
      %p162 = scmp.ne.s32.totalorder %s154, %s156
      %p163 = scmp.eq.s32.totalorder %s31, 1
      %p164 = por %p162, %p163
      %p165 = scmp.ne.s32.totalorder %s156, %s157
      %p166 = scmp.eq.s32.totalorder %s31, 0
      %p167 = por %p165, %p166
      %p168 = scmp.ne.s32.totalorder %s156, %s157
      %p169 = scmp.eq.s32.totalorder %s32, 1
      %p170 = por %p168, %p169
      %p172 = scmp.ne.s32.totalorder %s157, %s171
      %p173 = scmp.eq.s32.totalorder %s32, 0
      %p174 = por %p172, %p173
      %s176 = sadd.s32 %s175, 1
      %p179 = scmp.eq.s32.totalorder %s26, 1
      %p180 = scmp.ne.s32.totalorder %s175, %s177
      %p181 = scmp.eq.s32.totalorder %s26, 0
      %p182 = por %p180, %p181
      %p183 = scmp.ne.s32.totalorder %s175, %s177
      %p184 = scmp.eq.s32.totalorder %s31, 1
      %p185 = por %p183, %p184
      %p186 = scmp.ne.s32.totalorder %s177, %s178
      %p187 = scmp.eq.s32.totalorder %s31, 0
      %p188 = por %p186, %p187
      %p189 = scmp.ne.s32.totalorder %s177, %s178
      %p190 = scmp.eq.s32.totalorder %s32, 1
      %p191 = por %p189, %p190
      %p193 = scmp.ne.s32.totalorder %s178, %s192
      %p194 = scmp.eq.s32.totalorder %s32, 0
      %p195 = por %p193, %p194
      %s197 = sadd.s32 %s196, 1
      %p200 = scmp.eq.s32.totalorder %s26, 1
      %p201 = scmp.ne.s32.totalorder %s196, %s198
      %p202 = scmp.eq.s32.totalorder %s26, 0
      %p203 = por %p201, %p202
      %p204 = scmp.ne.s32.totalorder %s196, %s198
      %p205 = scmp.eq.s32.totalorder %s31, 1
      %p206 = por %p204, %p205
      %p207 = scmp.ne.s32.totalorder %s198, %s199
      %p208 = scmp.eq.s32.totalorder %s31, 0
      %p209 = por %p207, %p208
      %p210 = scmp.ne.s32.totalorder %s198, %s199
      %p211 = scmp.eq.s32.totalorder %s32, 1
      %p212 = por %p210, %p211
      %p214 = scmp.ne.s32.totalorder %s199, %s213
      %p215 = scmp.eq.s32.totalorder %s32, 0
      %p216 = por %p214, %p215
      %s218 = sadd.s32 %s217, 1
      %p221 = scmp.eq.s32.totalorder %s26, 1
      %p222 = scmp.ne.s32.totalorder %s217, %s219
      %p223 = scmp.eq.s32.totalorder %s26, 0
      %p224 = por %p222, %p223
      %p225 = scmp.ne.s32.totalorder %s217, %s219
      %p226 = scmp.eq.s32.totalorder %s31, 1
      %p227 = por %p225, %p226
      %p228 = scmp.ne.s32.totalorder %s219, %s220
      %p229 = scmp.eq.s32.totalorder %s31, 0
      %p230 = por %p228, %p229
      %p231 = scmp.ne.s32.totalorder %s219, %s220
      %p232 = scmp.eq.s32.totalorder %s32, 1
      %p233 = por %p231, %p232
      %p235 = scmp.ne.s32.totalorder %s220, %s234
      %p236 = scmp.eq.s32.totalorder %s32, 0
      %p237 = por %p235, %p236
      %s238 = ssub.s32 %s26, %s33
      %p239 = scmp.eq.s32.totalorder %s238, 0
      %s241 = sadd.s32 %s240, 1
      %s242 = scalar_select %p239, %s240, %s241
      %p245 = pneg %p239
      %p246 = scmp.eq.s32.totalorder %s26, 1
      %p247 = por %p245, %p246
      %p248 = scmp.ne.s32.totalorder %s240, %s243
      %p249 = scmp.eq.s32.totalorder %s26, 0
      %p250 = por %p248, %p249
      %p251 = scmp.ne.s32.totalorder %s240, %s243
      %p252 = scmp.eq.s32.totalorder %s31, 1
      %p253 = por %p251, %p252
      %p254 = scmp.ne.s32.totalorder %s243, %s244
      %p255 = scmp.eq.s32.totalorder %s31, 0
      %p256 = por %p254, %p255
      %p257 = scmp.ne.s32.totalorder %s243, %s244
      %p258 = scmp.eq.s32.totalorder %s32, 1
      %p259 = por %p257, %p258
      %p261 = scmp.ne.s32.totalorder %s244, %s260
      %p262 = scmp.eq.s32.totalorder %s32, 0
      %p263 = por %p261, %p262
      %p264 = scmp.le.s32.totalorder 1, %s26
      %p265 = scmp.lt.s32.totalorder %s26, 3
      %p266 = pnand %p264, %p265
      %p267 = pneg %p266
      // Predicated region
      $region9: #{tpu_custom_call.1} parent=5 // pred_check
        _
      $region10: #{tpu_custom_call.1} parent=5 // pred_check_branch
        %269 = sbr.rel (%p266) target = $region12
      $region11: #{tpu_custom_call.1} parent=5 // pred_region
        %s270 = ssub.s32 %s26, 1
        // Predicated region
        $region13: #{tpu_custom_call.1} parent=11 // pred_check
          %p271 = pneg %p125
        $region14: #{tpu_custom_call.1} parent=11 // pred_check_branch
          %273 = sbr.rel (%p271) target = $region16
        $region15: #{tpu_custom_call.1} parent=11 // pred_region
          _
        $region16: #{tpu_custom_call.1} parent=11 // pred_fallthru
          _
        // Predicated region
        $region17: #{tpu_custom_call.1} parent=11 // pred_check
          %p274 = pneg %p146
        $region18: #{tpu_custom_call.1} parent=11 // pred_check_branch
          %276 = sbr.rel (%p274) target = $region20
        $region19: #{tpu_custom_call.1} parent=11 // pred_region
          %s278 = ssub.s32 8192, 8192
          %279 = vsyncadd [#allocation9], %s278
          %s280 = sshll.u32 [#allocation8], 4
          %s281 = int_to_ptr.vmem [resolvable:$true] %s280
          %286 = dma.hbm_to_vmem [thread:$0]  %s4, 8192, %s281, [#allocation9], 256, 256, 16
        $region20: #{tpu_custom_call.1} parent=11 // pred_fallthru
          _
        // Predicated region
        $region21: #{tpu_custom_call.1} parent=11 // pred_check
          %p287 = pneg %p167
        $region22: #{tpu_custom_call.1} parent=11 // pred_check_branch
          %289 = sbr.rel (%p287) target = $region24
        $region23: #{tpu_custom_call.1} parent=11 // pred_region
          %s291 = ssub.s32 8192, 8192
          %292 = vsyncadd [#allocation9], %s291
          %s293 = sshll.u32 [#allocation10], 4
          %s294 = int_to_ptr.vmem [resolvable:$true] %s293
          %299 = dma.hbm_to_vmem [thread:$0]  %s5, 8192, %s294, [#allocation9], 256, 256, 16
        $region24: #{tpu_custom_call.1} parent=11 // pred_fallthru
          _
        // Predicated region
        $region25: #{tpu_custom_call.1} parent=11 // pred_check
          %p300 = pneg %p188
        $region26: #{tpu_custom_call.1} parent=11 // pred_check_branch
          %302 = sbr.rel (%p300) target = $region28
        $region27: #{tpu_custom_call.1} parent=11 // pred_region
          %s304 = ssub.s32 8192, 8192
          %305 = vsyncadd [#allocation12], %s304
          %s306 = sshll.u32 [#allocation11], 4
          %s307 = int_to_ptr.vmem [resolvable:$true] %s306
          %312 = dma.hbm_to_vmem [thread:$0]  %s6, 8192, %s307, [#allocation12], 256, 256, 16
        $region28: #{tpu_custom_call.1} parent=11 // pred_fallthru
          _
        // Predicated region
        $region29: #{tpu_custom_call.1} parent=11 // pred_check
          %p313 = pneg %p209
        $region30: #{tpu_custom_call.1} parent=11 // pred_check_branch
          %315 = sbr.rel (%p313) target = $region32
        $region31: #{tpu_custom_call.1} parent=11 // pred_region
          %s317 = ssub.s32 8192, 8192
          %318 = vsyncadd [#allocation12], %s317
          %s319 = sshll.u32 [#allocation13], 4
          %s320 = int_to_ptr.vmem [resolvable:$true] %s319
          %325 = dma.hbm_to_vmem [thread:$0]  %s7, 8192, %s320, [#allocation12], 256, 256, 16
        $region32: #{tpu_custom_call.1} parent=11 // pred_fallthru
          _
        // Predicated region
        $region33: #{tpu_custom_call.1} parent=11 // pred_check
          %p326 = pneg %p230
        $region34: #{tpu_custom_call.1} parent=11 // pred_check_branch
          %328 = sbr.rel (%p326) target = $region36
        $region35: #{tpu_custom_call.1} parent=11 // pred_region
          _
        $region36: #{tpu_custom_call.1} parent=11 // pred_fallthru
          _
      $region12: #{tpu_custom_call.1} parent=5 // pred_fallthru
        _
      %p329 = scmp.lt.s32.totalorder %s26, 2
      // Predicated region
      $region37: #{tpu_custom_call.1} parent=5 // pred_check
        %p330 = pneg %p329
      $region38: #{tpu_custom_call.1} parent=5 // pred_check_branch
        %332 = sbr.rel (%p330) target = $region40
      $region39: #{tpu_custom_call.1} parent=5 // pred_region
        // Predicated region
        $region41: #{tpu_custom_call.1} parent=39 // pred_check
          %p333 = pneg %p46
        $region42: #{tpu_custom_call.1} parent=39 // pred_check_branch
          %335 = sbr.rel (%p333) target = $region44
        $region43: #{tpu_custom_call.1} parent=39 // pred_region
          %s336 = sand.u32 %s36, 1
          %s337 = scalar_lea.sflag [#allocation3], %s336
          %s338 = sand.u32 %s36, 1
          %s339 = smul.addr %s338, 32
          %s340 = scalar_lea.vmem [#allocation2], %s339
          %s342 = ssub.s32 512, 512
          %343 = vsyncadd %s337, %s342
          %s344 = smul.addr %s26, 4
          %s345 = smul.addr %s344, 128
          %s346 = scalar_lea.hbm %s0, %s345
          %s347 = sshll.u32 %s340, 4
          %s348 = int_to_ptr.vmem [resolvable:$true] %s347
          %353 = dma.hbm_to_vmem [thread:$0]  %s346, 512, %s348, %s337, 256, 256, 16
        $region44: #{tpu_custom_call.1} parent=39 // pred_fallthru
          _
        // Predicated region
        $region45: #{tpu_custom_call.1} parent=39 // pred_check
          %p354 = pneg %p72
        $region46: #{tpu_custom_call.1} parent=39 // pred_check_branch
          %356 = sbr.rel (%p354) target = $region48
        $region47: #{tpu_custom_call.1} parent=39 // pred_region
          %s357 = sand.u32 %s26, 1
          %s358 = scalar_lea.sflag [#allocation6], %s357
          %s359 = sand.u32 %s62, 1
          %s360 = smul.addr %s359, 32
          %s361 = scalar_lea.vmem [#allocation5], %s360
          %s363 = ssub.s32 512, 512
          %364 = vsyncadd %s358, %s363
          %s365 = smul.addr %s26, 4
          %s366 = smul.addr %s365, 128
          %s367 = scalar_lea.hbm %s1, %s366
          %s368 = sshll.u32 %s361, 4
          %s369 = int_to_ptr.vmem [resolvable:$true] %s368
          %374 = dma.hbm_to_vmem [thread:$0]  %s367, 512, %s369, %s358, 256, 256, 16
        $region48: #{tpu_custom_call.1} parent=39 // pred_fallthru
          _
        // Predicated region
        $region49: #{tpu_custom_call.1} parent=39 // pred_check
          %p375 = pneg %p98
        $region50: #{tpu_custom_call.1} parent=39 // pred_check_branch
          %377 = sbr.rel (%p375) target = $region52
        $region51: #{tpu_custom_call.1} parent=39 // pred_region
          %s378 = sand.u32 %s26, 1
          %s379 = scalar_lea.sflag [#allocation6], %s378
          %s380 = sand.u32 %s88, 1
          %s381 = smul.addr %s380, 16
          %s382 = scalar_lea.vmem [#allocation7], %s381
          %s384 = ssub.s32 256, 256
          %385 = vsyncadd %s379, %s384
          %s386 = smul.addr %s26, 2
          %s387 = smul.addr %s386, 128
          %s388 = scalar_lea.hbm %s2, %s387
          %s390 = sshll.u32 %s382, 4
          %s391 = int_to_ptr.vmem [resolvable:$true] %s390
          %393 = dma.hbm_to_vmem [thread:$0]  %s388, 256, %s391, %s379
        $region52: #{tpu_custom_call.1} parent=39 // pred_fallthru
          _
      $region40: #{tpu_custom_call.1} parent=5 // pred_fallthru
        _
      %p394 = scmp.le.s32.totalorder 1, %s26
      %p395 = scmp.lt.s32.totalorder %s26, 3
      %p396 = pnand %p394, %p395
      %p397 = pneg %p396
      // Predicated region
      $region53: #{tpu_custom_call.1} parent=5 // pred_check
        _
      $region54: #{tpu_custom_call.1} parent=5 // pred_check_branch
        %399 = sbr.rel (%p396) target = $region56
      $region55: #{tpu_custom_call.1} parent=5 // pred_region
        %s400 = ssub.s32 %s26, 1
        %s401 = sand.u32 %s39, 1
        %s402 = scalar_lea.sflag [#allocation3], %s401
        %s403 = sand.u32 %s39, 1
        %s404 = smul.addr %s403, 32
        %s405 = scalar_lea.vmem [#allocation2], %s404
        // Predicated region
        $region57: #{tpu_custom_call.1} parent=55 // pred_check
          %p406 = pneg %p52
        $region58: #{tpu_custom_call.1} parent=55 // pred_check_branch
          %408 = sbr.rel (%p406) target = $region60
        $region59: #{tpu_custom_call.1} parent=55 // pred_region
          %409 = dma.done %s402, 512
        $region60: #{tpu_custom_call.1} parent=55 // pred_fallthru
          _
        %s410 = sand.u32 %s31, 1
        %s411 = scalar_lea.sflag [#allocation6], %s410
        %s412 = sand.u32 %s65, 1
        %s413 = smul.addr %s412, 32
        %s414 = scalar_lea.vmem [#allocation5], %s413
        // Predicated region
        $region61: #{tpu_custom_call.1} parent=55 // pred_check
          %p415 = pneg %p78
        $region62: #{tpu_custom_call.1} parent=55 // pred_check_branch
          %417 = sbr.rel (%p415) target = $region64
        $region63: #{tpu_custom_call.1} parent=55 // pred_region
          %418 = dma.done %s411, 512
        $region64: #{tpu_custom_call.1} parent=55 // pred_fallthru
          _
        %s419 = sand.u32 %s31, 1
        %s420 = scalar_lea.sflag [#allocation6], %s419
        %s421 = sand.u32 %s91, 1
        %s422 = smul.addr %s421, 16
        %s423 = scalar_lea.vmem [#allocation7], %s422
        // Predicated region
        $region65: #{tpu_custom_call.1} parent=55 // pred_check
          %p424 = pneg %p104
        $region66: #{tpu_custom_call.1} parent=55 // pred_check_branch
          %426 = sbr.rel (%p424) target = $region68
        $region67: #{tpu_custom_call.1} parent=55 // pred_region
          %427 = dma.done %s420, 256
        $region68: #{tpu_custom_call.1} parent=55 // pred_fallthru
          _
        // Predicated region
        $region69: #{tpu_custom_call.1} parent=55 // pred_check
          %p428 = pneg %p146
        $region70: #{tpu_custom_call.1} parent=55 // pred_check_branch
          %430 = sbr.rel (%p428) target = $region72
        $region71: #{tpu_custom_call.1} parent=55 // pred_region
          %431 = dma.done [#allocation9], 8192
        $region72: #{tpu_custom_call.1} parent=55 // pred_fallthru
          _
        // Predicated region
        $region73: #{tpu_custom_call.1} parent=55 // pred_check
          %p432 = pneg %p167
        $region74: #{tpu_custom_call.1} parent=55 // pred_check_branch
          %434 = sbr.rel (%p432) target = $region76
        $region75: #{tpu_custom_call.1} parent=55 // pred_region
          %435 = dma.done [#allocation9], 8192
        $region76: #{tpu_custom_call.1} parent=55 // pred_fallthru
          _
        // Predicated region
        $region77: #{tpu_custom_call.1} parent=55 // pred_check
          %p436 = pneg %p188
        $region78: #{tpu_custom_call.1} parent=55 // pred_check_branch
          %438 = sbr.rel (%p436) target = $region80
        $region79: #{tpu_custom_call.1} parent=55 // pred_region
          %439 = dma.done [#allocation12], 8192
        $region80: #{tpu_custom_call.1} parent=55 // pred_fallthru
          _
        // Predicated region
        $region81: #{tpu_custom_call.1} parent=55 // pred_check
          %p440 = pneg %p209
        $region82: #{tpu_custom_call.1} parent=55 // pred_check_branch
          %442 = sbr.rel (%p440) target = $region84
        $region83: #{tpu_custom_call.1} parent=55 // pred_region
          %443 = dma.done [#allocation12], 8192
        $region84: #{tpu_custom_call.1} parent=55 // pred_fallthru
          _
        %s444 = sand.u32 %s39, 1
        %s445 = scalar_lea.sflag [#allocation3], %s444
        %s446 = sand.u32 %s39, 1
        %s447 = smul.addr %s446, 32
        %s448 = scalar_lea.vmem [#allocation2], %s447
        %p449 = pneg %p52
        %p450 = pneg %p49
        %s451 = sand.u32 %s31, 1
        %s452 = scalar_lea.sflag [#allocation6], %s451
        %s453 = sand.u32 %s65, 1
        %s454 = smul.addr %s453, 32
        %s455 = scalar_lea.vmem [#allocation5], %s454
        %p456 = pneg %p78
        %p457 = pneg %p75
        %s458 = sand.u32 %s31, 1
        %s459 = scalar_lea.sflag [#allocation6], %s458
        %s460 = sand.u32 %s91, 1
        %s461 = smul.addr %s460, 16
        %s462 = scalar_lea.vmem [#allocation7], %s461
        %p463 = pneg %p104
        %p464 = pneg %p101
        %p465 = pneg %p125
        %p466 = pneg %p122
        %p467 = pneg %p146
        %p468 = pneg %p143
        %p469 = pneg %p167
        %p470 = pneg %p164
        %p471 = pneg %p188
        %p472 = pneg %p185
        %p473 = pneg %p209
        %p474 = pneg %p206
        %p475 = pneg %p230
        %p476 = pneg %p227
        %p477 = pneg %p256
        %p478 = pneg %p253
        %s479 = sand.u32 %s243, 1
        %s480 = scalar_lea.sflag [#allocation4], %s479
        %s481 = sand.u32 %s243, 1
        %s482 = smul.addr %s481, 16
        %s483 = scalar_lea.vmem [#allocation14], %s482
        %v484 = vld [vmem:[%s405] sm:$0xff]
        %v485 = vld [vmem:[%s405 + $0x8] sm:$0xff]
        %v486 = vld [vmem:[%s405 + $0x10] sm:$0xff]
        %v487 = vld [vmem:[%s405 + $0x18] sm:$0xff]
        %v488 = vld [vmem:[%s414] sm:$0xff]
        %v489 = vld [vmem:[%s414 + $0x8] sm:$0xff]
        %v490 = vld [vmem:[%s414 + $0x10] sm:$0xff]
        %v491 = vld [vmem:[%s414 + $0x18] sm:$0xff]
        %v492 = vld [vmem:[%s423] sm:$0xff]
        %v493 = vld [vmem:[%s423 + $0x8] sm:$0xff]
        %v494 = vld [vmem:[#allocation8] sm:$0xff]
        %v495 = vld [vmem:[#allocation8 + $0x8] sm:$0xff]
        %v496 = vld [vmem:[#allocation8 + $0x10] sm:$0xff]
        %v497 = vld [vmem:[#allocation8 + $0x18] sm:$0xff]
        %v498 = vld [vmem:[#allocation8 + $0x20] sm:$0xff]
        %v499 = vld [vmem:[#allocation8 + $0x28] sm:$0xff]
        %v500 = vld [vmem:[#allocation8 + $0x30] sm:$0xff]
        %v501 = vld [vmem:[#allocation8 + $0x38] sm:$0xff]
        %v502 = vld [vmem:[#allocation8 + $0x40] sm:$0xff]
        %v503 = vld [vmem:[#allocation8 + $0x48] sm:$0xff]
        %v504 = vld [vmem:[#allocation8 + $0x50] sm:$0xff]
        %v505 = vld [vmem:[#allocation8 + $0x58] sm:$0xff]
        %v506 = vld [vmem:[#allocation8 + $0x60] sm:$0xff]
        %v507 = vld [vmem:[#allocation8 + $0x68] sm:$0xff]
        %v508 = vld [vmem:[#allocation8 + $0x70] sm:$0xff]
        %v509 = vld [vmem:[#allocation8 + $0x78] sm:$0xff]
        %v510 = vld [vmem:[#allocation8 + $0x80] sm:$0xff]
        %v511 = vld [vmem:[#allocation8 + $0x88] sm:$0xff]
        %v512 = vld [vmem:[#allocation8 + $0x90] sm:$0xff]
        %v513 = vld [vmem:[#allocation8 + $0x98] sm:$0xff]
        %v514 = vld [vmem:[#allocation8 + $0xa0] sm:$0xff]
        %v515 = vld [vmem:[#allocation8 + $0xa8] sm:$0xff]
        %v516 = vld [vmem:[#allocation8 + $0xb0] sm:$0xff]
        %v517 = vld [vmem:[#allocation8 + $0xb8] sm:$0xff]
        %v518 = vld [vmem:[#allocation8 + $0xc0] sm:$0xff]
        %v519 = vld [vmem:[#allocation8 + $0xc8] sm:$0xff]
        %v520 = vld [vmem:[#allocation8 + $0xd0] sm:$0xff]
        %v521 = vld [vmem:[#allocation8 + $0xd8] sm:$0xff]
        %v522 = vld [vmem:[#allocation8 + $0xe0] sm:$0xff]
        %v523 = vld [vmem:[#allocation8 + $0xe8] sm:$0xff]
        %v524 = vld [vmem:[#allocation8 + $0xf0] sm:$0xff]
        %v525 = vld [vmem:[#allocation8 + $0xf8] sm:$0xff]
        %v526 = vld [vmem:[#allocation8 + $0x100] sm:$0xff]
        %v527 = vld [vmem:[#allocation8 + $0x108] sm:$0xff]
        %v528 = vld [vmem:[#allocation8 + $0x110] sm:$0xff]
        %v529 = vld [vmem:[#allocation8 + $0x118] sm:$0xff]
        %v530 = vld [vmem:[#allocation8 + $0x120] sm:$0xff]
        %v531 = vld [vmem:[#allocation8 + $0x128] sm:$0xff]
        %v532 = vld [vmem:[#allocation8 + $0x130] sm:$0xff]
        %v533 = vld [vmem:[#allocation8 + $0x138] sm:$0xff]
        %v534 = vld [vmem:[#allocation8 + $0x140] sm:$0xff]
        %v535 = vld [vmem:[#allocation8 + $0x148] sm:$0xff]
        %v536 = vld [vmem:[#allocation8 + $0x150] sm:$0xff]
        %v537 = vld [vmem:[#allocation8 + $0x158] sm:$0xff]
        %v538 = vld [vmem:[#allocation8 + $0x160] sm:$0xff]
        %v539 = vld [vmem:[#allocation8 + $0x168] sm:$0xff]
        %v540 = vld [vmem:[#allocation8 + $0x170] sm:$0xff]
        %v541 = vld [vmem:[#allocation8 + $0x178] sm:$0xff]
        %v542 = vld [vmem:[#allocation8 + $0x180] sm:$0xff]
        %v543 = vld [vmem:[#allocation8 + $0x188] sm:$0xff]
        %v544 = vld [vmem:[#allocation8 + $0x190] sm:$0xff]
        %v545 = vld [vmem:[#allocation8 + $0x198] sm:$0xff]
        %v546 = vld [vmem:[#allocation8 + $0x1a0] sm:$0xff]
        %v547 = vld [vmem:[#allocation8 + $0x1a8] sm:$0xff]
        %v548 = vld [vmem:[#allocation8 + $0x1b0] sm:$0xff]
        %v549 = vld [vmem:[#allocation8 + $0x1b8] sm:$0xff]
        %v550 = vld [vmem:[#allocation8 + $0x1c0] sm:$0xff]
        %v551 = vld [vmem:[#allocation8 + $0x1c8] sm:$0xff]
        %v552 = vld [vmem:[#allocation8 + $0x1d0] sm:$0xff]
        %v553 = vld [vmem:[#allocation8 + $0x1d8] sm:$0xff]
        %v554 = vld [vmem:[#allocation8 + $0x1e0] sm:$0xff]
        %v555 = vld [vmem:[#allocation8 + $0x1e8] sm:$0xff]
        %v556 = vld [vmem:[#allocation8 + $0x1f0] sm:$0xff]
        %v557 = vld [vmem:[#allocation8 + $0x1f8] sm:$0xff]
        %558 = vmatprep.subr.mxu0 %v495
        %559 = vmatpush1.msra.mxu0 %v494
        %560 = vmatprep.subr.mxu0 %v497
        %561 = vmatpush1.msra.mxu0 %v496
        %562 = vmatprep.subr.mxu0 %v499
        %563 = vmatpush1.msra.mxu0 %v498
        %564 = vmatprep.subr.mxu0 %v501
        %565 = vmatpush1.msra.mxu0 %v500
        %566 = vmatprep.subr.mxu0 %v503
        %567 = vmatpush1.msra.mxu0 %v502
        %568 = vmatprep.subr.mxu0 %v505
        %569 = vmatpush1.msra.mxu0 %v504
        %570 = vmatprep.subr.mxu0 %v507
        %571 = vmatpush1.msra.mxu0 %v506
        %572 = vmatprep.subr.mxu0 %v509
        %573 = vmatpush1.msra.mxu0 %v508
        %574 = vmatprep.subr.mxu0 %v511
        %575 = vmatpush1.msra.mxu0 %v510
        %576 = vmatprep.subr.mxu0 %v513
        %577 = vmatpush1.msra.mxu0 %v512
        %578 = vmatprep.subr.mxu0 %v515
        %579 = vmatpush1.msra.mxu0 %v514
        %580 = vmatprep.subr.mxu0 %v517
        %581 = vmatpush1.msra.mxu0 %v516
        %582 = vmatprep.subr.mxu0 %v519
        %583 = vmatpush1.msra.mxu0 %v518
        %584 = vmatprep.subr.mxu0 %v521
        %585 = vmatpush1.msra.mxu0 %v520
        %586 = vmatprep.subr.mxu0 %v523
        %587 = vmatpush1.msra.mxu0 %v522
        %588 = vmatprep.subr.mxu0 %v525
        %589 = vmatpush1.msra.mxu0 %v524
        %590 = vmatprep.subr.mxu0 %v527
        %591 = vmatpush1.msra.mxu0 %v526
        %592 = vmatprep.subr.mxu0 %v529
        %593 = vmatpush1.msra.mxu0 %v528
        %594 = vmatprep.subr.mxu0 %v531
        %595 = vmatpush1.msra.mxu0 %v530
        %596 = vmatprep.subr.mxu0 %v533
        %597 = vmatpush1.msra.mxu0 %v532
        %598 = vmatprep.subr.mxu0 %v535
        %599 = vmatpush1.msra.mxu0 %v534
        %600 = vmatprep.subr.mxu0 %v537
        %601 = vmatpush1.msra.mxu0 %v536
        %602 = vmatprep.subr.mxu0 %v539
        %603 = vmatpush1.msra.mxu0 %v538
        %604 = vmatprep.subr.mxu0 %v541
        %605 = vmatpush1.msra.mxu0 %v540
        %606 = vmatprep.subr.mxu0 %v543
        %607 = vmatpush1.msra.mxu0 %v542
        %608 = vmatprep.subr.mxu0 %v545
        %609 = vmatpush1.msra.mxu0 %v544
        %610 = vmatprep.subr.mxu0 %v547
        %611 = vmatpush1.msra.mxu0 %v546
        %612 = vmatprep.subr.mxu0 %v549
        %613 = vmatpush1.msra.mxu0 %v548
        %614 = vmatprep.subr.mxu0 %v551
        %615 = vmatpush1.msra.mxu0 %v550
        %616 = vmatprep.subr.mxu0 %v553
        %617 = vmatpush1.msra.mxu0 %v552
        %618 = vmatprep.subr.mxu0 %v555
        %619 = vmatpush1.msra.mxu0 %v554
        %620 = vmatprep.subr.mxu0 %v557
        %621 = vmatpush1.msra.mxu0 %v556
        %622 = vmatprep.mubr.f32.mxu0 %v485
        %623 = vmatmul.mubr.f32.gmra.mrb[0].mxu0 %v484
        %v624 = vpop.f32.mrb[0].mxu0
        %v625 = vadd.f32 0.0, %v624
        %v626 = vpop.f32.mrb[0].mxu0
        %v627 = vadd.f32 0.0, %v626
        %628 = vmatprep.mubr.f32.mxu0 %v487
        %629 = vmatmul.mubr.f32.gmra.mrb[0].mxu0 %v486
        %v630 = vpop.f32.mrb[0].mxu0
        %v631 = vadd.f32 0.0, %v630
        %v632 = vpop.f32.mrb[0].mxu0
        %v633 = vadd.f32 0.0, %v632
        %634 = vdwg.mxu0
        %v635 = vld [vmem:[#allocation10] sm:$0xff]
        %v636 = vld [vmem:[#allocation10 + $0x8] sm:$0xff]
        %v637 = vld [vmem:[#allocation10 + $0x10] sm:$0xff]
        %v638 = vld [vmem:[#allocation10 + $0x18] sm:$0xff]
        %v639 = vld [vmem:[#allocation10 + $0x20] sm:$0xff]
        %v640 = vld [vmem:[#allocation10 + $0x28] sm:$0xff]
        %v641 = vld [vmem:[#allocation10 + $0x30] sm:$0xff]
        %v642 = vld [vmem:[#allocation10 + $0x38] sm:$0xff]
        %v643 = vld [vmem:[#allocation10 + $0x40] sm:$0xff]
        %v644 = vld [vmem:[#allocation10 + $0x48] sm:$0xff]
        %v645 = vld [vmem:[#allocation10 + $0x50] sm:$0xff]
        %v646 = vld [vmem:[#allocation10 + $0x58] sm:$0xff]
        %v647 = vld [vmem:[#allocation10 + $0x60] sm:$0xff]
        %v648 = vld [vmem:[#allocation10 + $0x68] sm:$0xff]
        %v649 = vld [vmem:[#allocation10 + $0x70] sm:$0xff]
        %v650 = vld [vmem:[#allocation10 + $0x78] sm:$0xff]
        %v651 = vld [vmem:[#allocation10 + $0x80] sm:$0xff]
        %v652 = vld [vmem:[#allocation10 + $0x88] sm:$0xff]
        %v653 = vld [vmem:[#allocation10 + $0x90] sm:$0xff]
        %v654 = vld [vmem:[#allocation10 + $0x98] sm:$0xff]
        %v655 = vld [vmem:[#allocation10 + $0xa0] sm:$0xff]
        %v656 = vld [vmem:[#allocation10 + $0xa8] sm:$0xff]
        %v657 = vld [vmem:[#allocation10 + $0xb0] sm:$0xff]
        %v658 = vld [vmem:[#allocation10 + $0xb8] sm:$0xff]
        %v659 = vld [vmem:[#allocation10 + $0xc0] sm:$0xff]
        %v660 = vld [vmem:[#allocation10 + $0xc8] sm:$0xff]
        %v661 = vld [vmem:[#allocation10 + $0xd0] sm:$0xff]
        %v662 = vld [vmem:[#allocation10 + $0xd8] sm:$0xff]
        %v663 = vld [vmem:[#allocation10 + $0xe0] sm:$0xff]
        %v664 = vld [vmem:[#allocation10 + $0xe8] sm:$0xff]
        %v665 = vld [vmem:[#allocation10 + $0xf0] sm:$0xff]
        %v666 = vld [vmem:[#allocation10 + $0xf8] sm:$0xff]
        %v667 = vld [vmem:[#allocation10 + $0x100] sm:$0xff]
        %v668 = vld [vmem:[#allocation10 + $0x108] sm:$0xff]
        %v669 = vld [vmem:[#allocation10 + $0x110] sm:$0xff]
        %v670 = vld [vmem:[#allocation10 + $0x118] sm:$0xff]
        %v671 = vld [vmem:[#allocation10 + $0x120] sm:$0xff]
        %v672 = vld [vmem:[#allocation10 + $0x128] sm:$0xff]
        %v673 = vld [vmem:[#allocation10 + $0x130] sm:$0xff]
        %v674 = vld [vmem:[#allocation10 + $0x138] sm:$0xff]
        %v675 = vld [vmem:[#allocation10 + $0x140] sm:$0xff]
        %v676 = vld [vmem:[#allocation10 + $0x148] sm:$0xff]
        %v677 = vld [vmem:[#allocation10 + $0x150] sm:$0xff]
        %v678 = vld [vmem:[#allocation10 + $0x158] sm:$0xff]
        %v679 = vld [vmem:[#allocation10 + $0x160] sm:$0xff]
        %v680 = vld [vmem:[#allocation10 + $0x168] sm:$0xff]
        %v681 = vld [vmem:[#allocation10 + $0x170] sm:$0xff]
        %v682 = vld [vmem:[#allocation10 + $0x178] sm:$0xff]
        %v683 = vld [vmem:[#allocation10 + $0x180] sm:$0xff]
        %v684 = vld [vmem:[#allocation10 + $0x188] sm:$0xff]
        %v685 = vld [vmem:[#allocation10 + $0x190] sm:$0xff]
        %v686 = vld [vmem:[#allocation10 + $0x198] sm:$0xff]
        %v687 = vld [vmem:[#allocation10 + $0x1a0] sm:$0xff]
        %v688 = vld [vmem:[#allocation10 + $0x1a8] sm:$0xff]
        %v689 = vld [vmem:[#allocation10 + $0x1b0] sm:$0xff]
        %v690 = vld [vmem:[#allocation10 + $0x1b8] sm:$0xff]
        %v691 = vld [vmem:[#allocation10 + $0x1c0] sm:$0xff]
        %v692 = vld [vmem:[#allocation10 + $0x1c8] sm:$0xff]
        %v693 = vld [vmem:[#allocation10 + $0x1d0] sm:$0xff]
        %v694 = vld [vmem:[#allocation10 + $0x1d8] sm:$0xff]
        %v695 = vld [vmem:[#allocation10 + $0x1e0] sm:$0xff]
        %v696 = vld [vmem:[#allocation10 + $0x1e8] sm:$0xff]
        %v697 = vld [vmem:[#allocation10 + $0x1f0] sm:$0xff]
        %v698 = vld [vmem:[#allocation10 + $0x1f8] sm:$0xff]
        %699 = vmatprep.subr.mxu0 %v636
        %700 = vmatpush1.msra.mxu0 %v635
        %701 = vmatprep.subr.mxu0 %v638
        %702 = vmatpush1.msra.mxu0 %v637
        %703 = vmatprep.subr.mxu0 %v640
        %704 = vmatpush1.msra.mxu0 %v639
        %705 = vmatprep.subr.mxu0 %v642
        %706 = vmatpush1.msra.mxu0 %v641
        %707 = vmatprep.subr.mxu0 %v644
        %708 = vmatpush1.msra.mxu0 %v643
        %709 = vmatprep.subr.mxu0 %v646
        %710 = vmatpush1.msra.mxu0 %v645
        %711 = vmatprep.subr.mxu0 %v648
        %712 = vmatpush1.msra.mxu0 %v647
        %713 = vmatprep.subr.mxu0 %v650
        %714 = vmatpush1.msra.mxu0 %v649
        %715 = vmatprep.subr.mxu0 %v652
        %716 = vmatpush1.msra.mxu0 %v651
        %717 = vmatprep.subr.mxu0 %v654
        %718 = vmatpush1.msra.mxu0 %v653
        %719 = vmatprep.subr.mxu0 %v656
        %720 = vmatpush1.msra.mxu0 %v655
        %721 = vmatprep.subr.mxu0 %v658
        %722 = vmatpush1.msra.mxu0 %v657
        %723 = vmatprep.subr.mxu0 %v660
        %724 = vmatpush1.msra.mxu0 %v659
        %725 = vmatprep.subr.mxu0 %v662
        %726 = vmatpush1.msra.mxu0 %v661
        %727 = vmatprep.subr.mxu0 %v664
        %728 = vmatpush1.msra.mxu0 %v663
        %729 = vmatprep.subr.mxu0 %v666
        %730 = vmatpush1.msra.mxu0 %v665
        %731 = vmatprep.subr.mxu0 %v668
        %732 = vmatpush1.msra.mxu0 %v667
        %733 = vmatprep.subr.mxu0 %v670
        %734 = vmatpush1.msra.mxu0 %v669
        %735 = vmatprep.subr.mxu0 %v672
        %736 = vmatpush1.msra.mxu0 %v671
        %737 = vmatprep.subr.mxu0 %v674
        %738 = vmatpush1.msra.mxu0 %v673
        %739 = vmatprep.subr.mxu0 %v676
        %740 = vmatpush1.msra.mxu0 %v675
        %741 = vmatprep.subr.mxu0 %v678
        %742 = vmatpush1.msra.mxu0 %v677
        %743 = vmatprep.subr.mxu0 %v680
        %744 = vmatpush1.msra.mxu0 %v679
        %745 = vmatprep.subr.mxu0 %v682
        %746 = vmatpush1.msra.mxu0 %v681
        %747 = vmatprep.subr.mxu0 %v684
        %748 = vmatpush1.msra.mxu0 %v683
        %749 = vmatprep.subr.mxu0 %v686
        %750 = vmatpush1.msra.mxu0 %v685
        %751 = vmatprep.subr.mxu0 %v688
        %752 = vmatpush1.msra.mxu0 %v687
        %753 = vmatprep.subr.mxu0 %v690
        %754 = vmatpush1.msra.mxu0 %v689
        %755 = vmatprep.subr.mxu0 %v692
        %756 = vmatpush1.msra.mxu0 %v691
        %757 = vmatprep.subr.mxu0 %v694
        %758 = vmatpush1.msra.mxu0 %v693
        %759 = vmatprep.subr.mxu0 %v696
        %760 = vmatpush1.msra.mxu0 %v695
        %761 = vmatprep.subr.mxu0 %v698
        %762 = vmatpush1.msra.mxu0 %v697
        %763 = vmatprep.mubr.f32.mxu0 %v489
        %764 = vmatmul.mubr.f32.gmra.mrb[0].mxu0 %v488
        %v765 = vpop.f32.mrb[0].mxu0
        %v766 = vadd.f32 0.0, %v765
        %v767 = vpop.f32.mrb[0].mxu0
        %v768 = vadd.f32 0.0, %v767
        %769 = vmatprep.mubr.f32.mxu0 %v491
        %770 = vmatmul.mubr.f32.gmra.mrb[0].mxu0 %v490
        %v771 = vpop.f32.mrb[0].mxu0
        %v772 = vadd.f32 0.0, %v771
        %v773 = vpop.f32.mrb[0].mxu0
        %v774 = vadd.f32 0.0, %v773
        %775 = vdwg.mxu0
        %v776 = vld [vmem:[#allocation11] sm:$0xff]
        %v777 = vld [vmem:[#allocation11 + $0x8] sm:$0xff]
        %v778 = vld [vmem:[#allocation11 + $0x10] sm:$0xff]
        %v779 = vld [vmem:[#allocation11 + $0x18] sm:$0xff]
        %v780 = vld [vmem:[#allocation11 + $0x20] sm:$0xff]
        %v781 = vld [vmem:[#allocation11 + $0x28] sm:$0xff]
        %v782 = vld [vmem:[#allocation11 + $0x30] sm:$0xff]
        %v783 = vld [vmem:[#allocation11 + $0x38] sm:$0xff]
        %v784 = vld [vmem:[#allocation11 + $0x40] sm:$0xff]
        %v785 = vld [vmem:[#allocation11 + $0x48] sm:$0xff]
        %v786 = vld [vmem:[#allocation11 + $0x50] sm:$0xff]
        %v787 = vld [vmem:[#allocation11 + $0x58] sm:$0xff]
        %v788 = vld [vmem:[#allocation11 + $0x60] sm:$0xff]
        %v789 = vld [vmem:[#allocation11 + $0x68] sm:$0xff]
        %v790 = vld [vmem:[#allocation11 + $0x70] sm:$0xff]
        %v791 = vld [vmem:[#allocation11 + $0x78] sm:$0xff]
        %v792 = vld [vmem:[#allocation11 + $0x80] sm:$0xff]
        %v793 = vld [vmem:[#allocation11 + $0x88] sm:$0xff]
        %v794 = vld [vmem:[#allocation11 + $0x90] sm:$0xff]
        %v795 = vld [vmem:[#allocation11 + $0x98] sm:$0xff]
        %v796 = vld [vmem:[#allocation11 + $0xa0] sm:$0xff]
        %v797 = vld [vmem:[#allocation11 + $0xa8] sm:$0xff]
        %v798 = vld [vmem:[#allocation11 + $0xb0] sm:$0xff]
        %v799 = vld [vmem:[#allocation11 + $0xb8] sm:$0xff]
        %v800 = vld [vmem:[#allocation11 + $0xc0] sm:$0xff]
        %v801 = vld [vmem:[#allocation11 + $0xc8] sm:$0xff]
        %v802 = vld [vmem:[#allocation11 + $0xd0] sm:$0xff]
        %v803 = vld [vmem:[#allocation11 + $0xd8] sm:$0xff]
        %v804 = vld [vmem:[#allocation11 + $0xe0] sm:$0xff]
        %v805 = vld [vmem:[#allocation11 + $0xe8] sm:$0xff]
        %v806 = vld [vmem:[#allocation11 + $0xf0] sm:$0xff]
        %v807 = vld [vmem:[#allocation11 + $0xf8] sm:$0xff]
        %v808 = vld [vmem:[#allocation11 + $0x100] sm:$0xff]
        %v809 = vld [vmem:[#allocation11 + $0x108] sm:$0xff]
        %v810 = vld [vmem:[#allocation11 + $0x110] sm:$0xff]
        %v811 = vld [vmem:[#allocation11 + $0x118] sm:$0xff]
        %v812 = vld [vmem:[#allocation11 + $0x120] sm:$0xff]
        %v813 = vld [vmem:[#allocation11 + $0x128] sm:$0xff]
        %v814 = vld [vmem:[#allocation11 + $0x130] sm:$0xff]
        %v815 = vld [vmem:[#allocation11 + $0x138] sm:$0xff]
        %v816 = vld [vmem:[#allocation11 + $0x140] sm:$0xff]
        %v817 = vld [vmem:[#allocation11 + $0x148] sm:$0xff]
        %v818 = vld [vmem:[#allocation11 + $0x150] sm:$0xff]
        %v819 = vld [vmem:[#allocation11 + $0x158] sm:$0xff]
        %v820 = vld [vmem:[#allocation11 + $0x160] sm:$0xff]
        %v821 = vld [vmem:[#allocation11 + $0x168] sm:$0xff]
        %v822 = vld [vmem:[#allocation11 + $0x170] sm:$0xff]
        %v823 = vld [vmem:[#allocation11 + $0x178] sm:$0xff]
        %v824 = vld [vmem:[#allocation11 + $0x180] sm:$0xff]
        %v825 = vld [vmem:[#allocation11 + $0x188] sm:$0xff]
        %v826 = vld [vmem:[#allocation11 + $0x190] sm:$0xff]
        %v827 = vld [vmem:[#allocation11 + $0x198] sm:$0xff]
        %v828 = vld [vmem:[#allocation11 + $0x1a0] sm:$0xff]
        %v829 = vld [vmem:[#allocation11 + $0x1a8] sm:$0xff]
        %v830 = vld [vmem:[#allocation11 + $0x1b0] sm:$0xff]
        %v831 = vld [vmem:[#allocation11 + $0x1b8] sm:$0xff]
        %v832 = vld [vmem:[#allocation11 + $0x1c0] sm:$0xff]
        %v833 = vld [vmem:[#allocation11 + $0x1c8] sm:$0xff]
        %v834 = vld [vmem:[#allocation11 + $0x1d0] sm:$0xff]
        %v835 = vld [vmem:[#allocation11 + $0x1d8] sm:$0xff]
        %v836 = vld [vmem:[#allocation11 + $0x1e0] sm:$0xff]
        %v837 = vld [vmem:[#allocation11 + $0x1e8] sm:$0xff]
        %v838 = vld [vmem:[#allocation11 + $0x1f0] sm:$0xff]
        %v839 = vld [vmem:[#allocation11 + $0x1f8] sm:$0xff]
        %840 = vmatprep.subr.mxu0 %v777
        %841 = vmatpush1.msra.mxu0 %v776
        %842 = vmatprep.subr.mxu0 %v779
        %843 = vmatpush1.msra.mxu0 %v778
        %844 = vmatprep.subr.mxu0 %v781
        %845 = vmatpush1.msra.mxu0 %v780
        %846 = vmatprep.subr.mxu0 %v783
        %847 = vmatpush1.msra.mxu0 %v782
        %848 = vmatprep.subr.mxu0 %v785
        %849 = vmatpush1.msra.mxu0 %v784
        %850 = vmatprep.subr.mxu0 %v787
        %851 = vmatpush1.msra.mxu0 %v786
        %852 = vmatprep.subr.mxu0 %v789
        %853 = vmatpush1.msra.mxu0 %v788
        %854 = vmatprep.subr.mxu0 %v791
        %855 = vmatpush1.msra.mxu0 %v790
        %856 = vmatprep.subr.mxu0 %v793
        %857 = vmatpush1.msra.mxu0 %v792
        %858 = vmatprep.subr.mxu0 %v795
        %859 = vmatpush1.msra.mxu0 %v794
        %860 = vmatprep.subr.mxu0 %v797
        %861 = vmatpush1.msra.mxu0 %v796
        %862 = vmatprep.subr.mxu0 %v799
        %863 = vmatpush1.msra.mxu0 %v798
        %864 = vmatprep.subr.mxu0 %v801
        %865 = vmatpush1.msra.mxu0 %v800
        %866 = vmatprep.subr.mxu0 %v803
        %867 = vmatpush1.msra.mxu0 %v802
        %868 = vmatprep.subr.mxu0 %v805
        %869 = vmatpush1.msra.mxu0 %v804
        %870 = vmatprep.subr.mxu0 %v807
        %871 = vmatpush1.msra.mxu0 %v806
        %872 = vmatprep.subr.mxu0 %v809
        %873 = vmatpush1.msra.mxu0 %v808
        %874 = vmatprep.subr.mxu0 %v811
        %875 = vmatpush1.msra.mxu0 %v810
        %876 = vmatprep.subr.mxu0 %v813
        %877 = vmatpush1.msra.mxu0 %v812
        %878 = vmatprep.subr.mxu0 %v815
        %879 = vmatpush1.msra.mxu0 %v814
        %880 = vmatprep.subr.mxu0 %v817
        %881 = vmatpush1.msra.mxu0 %v816
        %882 = vmatprep.subr.mxu0 %v819
        %883 = vmatpush1.msra.mxu0 %v818
        %884 = vmatprep.subr.mxu0 %v821
        %885 = vmatpush1.msra.mxu0 %v820
        %886 = vmatprep.subr.mxu0 %v823
        %887 = vmatpush1.msra.mxu0 %v822
        %888 = vmatprep.subr.mxu0 %v825
        %889 = vmatpush1.msra.mxu0 %v824
        %890 = vmatprep.subr.mxu0 %v827
        %891 = vmatpush1.msra.mxu0 %v826
        %892 = vmatprep.subr.mxu0 %v829
        %893 = vmatpush1.msra.mxu0 %v828
        %894 = vmatprep.subr.mxu0 %v831
        %895 = vmatpush1.msra.mxu0 %v830
        %896 = vmatprep.subr.mxu0 %v833
        %897 = vmatpush1.msra.mxu0 %v832
        %898 = vmatprep.subr.mxu0 %v835
        %899 = vmatpush1.msra.mxu0 %v834
        %900 = vmatprep.subr.mxu0 %v837
        %901 = vmatpush1.msra.mxu0 %v836
        %902 = vmatprep.subr.mxu0 %v839
        %903 = vmatpush1.msra.mxu0 %v838
        %904 = vmatprep.mubr.f32.mxu0 %v493
        %905 = vmatmul.mubr.f32.gmra.mrb[0].mxu0 %v492
        %v906 = vpop.f32.mrb[0].mxu0
        %v907 = vadd.f32 0.0, %v906
        %v908 = vpop.f32.mrb[0].mxu0
        %v909 = vadd.f32 0.0, %v908
        %910 = vdwg.mxu0
        %v911 = vld [vmem:[%s3] sm:$0xff]
        %vm912 = vcmask 261120
        %v914 = vsel %vm912, %v907, 0
        %v917 = vsel %vm912, %v766, 0
        %v920 = vsel %vm912, %v772, 0
        %922 = vmatprep.subr.mxu0 0.0
        %923 = vmatpush1.xpose.msra.mxu0 %v917
        %924 = vmatprep.subr.mxu0 0.0
        %925 = vmatpush1.xpose.msra.mxu0 %v920
        %926 = vmatprep.subr.mxu0 0.0
        %927 = vmatpush1.xpose.msra.mxu0 0.0
        %928 = vmatprep.subr.mxu0 0.0
        %929 = vmatpush1.xpose.msra.mxu0 0.0
        %930 = vmatprep.subr.mxu0 0.0
        %931 = vmatpush1.xpose.msra.mxu0 0.0
        %932 = vmatprep.subr.mxu0 0.0
        %933 = vmatpush1.xpose.msra.mxu0 0.0
        %934 = vmatprep.subr.mxu0 0.0
        %935 = vmatpush1.xpose.msra.mxu0 0.0
        %936 = vmatprep.subr.mxu0 0.0
        %937 = vmatpush1.xpose.msra.mxu0 0.0
        %938 = vmatprep.subr.mxu0 0.0
        %939 = vmatpush1.xpose.msra.mxu0 0.0
        %940 = vmatprep.subr.mxu0 0.0
        %941 = vmatpush1.xpose.msra.mxu0 0.0
        %942 = vmatprep.subr.mxu0 0.0
        %943 = vmatpush1.xpose.msra.mxu0 0.0
        %944 = vmatprep.subr.mxu0 0.0
        %945 = vmatpush1.xpose.msra.mxu0 0.0
        %946 = vmatprep.subr.mxu0 0.0
        %947 = vmatpush1.xpose.msra.mxu0 0.0
        %948 = vmatprep.subr.mxu0 0.0
        %949 = vmatpush1.xpose.msra.mxu0 0.0
        %950 = vmatprep.subr.mxu0 0.0
        %951 = vmatpush1.xpose.msra.mxu0 0.0
        %952 = vmatprep.subr.mxu0 0.0
        %953 = vmatpush1.xpose.msra.mxu0 0.0
        %954 = vmatprep.subr.mxu0 0.0
        %955 = vmatpush1.xpose.msra.mxu0 0.0
        %956 = vmatprep.subr.mxu0 0.0
        %957 = vmatpush1.xpose.msra.mxu0 0.0
        %958 = vmatprep.subr.mxu0 0.0
        %959 = vmatpush1.xpose.msra.mxu0 0.0
        %960 = vmatprep.subr.mxu0 0.0
        %961 = vmatpush1.xpose.msra.mxu0 0.0
        %962 = vmatprep.subr.mxu0 0.0
        %963 = vmatpush1.xpose.msra.mxu0 0.0
        %964 = vmatprep.subr.mxu0 0.0
        %965 = vmatpush1.xpose.msra.mxu0 0.0
        %966 = vmatprep.subr.mxu0 0.0
        %967 = vmatpush1.xpose.msra.mxu0 0.0
        %968 = vmatprep.subr.mxu0 0.0
        %969 = vmatpush1.xpose.msra.mxu0 0.0
        %970 = vmatprep.subr.mxu0 0.0
        %971 = vmatpush1.xpose.msra.mxu0 0.0
        %972 = vmatprep.subr.mxu0 0.0
        %973 = vmatpush1.xpose.msra.mxu0 0.0
        %974 = vmatprep.subr.mxu0 0.0
        %975 = vmatpush1.xpose.msra.mxu0 0.0
        %976 = vmatprep.subr.mxu0 0.0
        %977 = vmatpush1.xpose.msra.mxu0 0.0
        %978 = vmatprep.subr.mxu0 0.0
        %979 = vmatpush1.xpose.msra.mxu0 0.0
        %980 = vmatprep.subr.mxu0 0.0
        %981 = vmatpush1.xpose.msra.mxu0 0.0
        %982 = vmatprep.subr.mxu0 0.0
        %983 = vmatpush1.xpose.msra.mxu0 0.0
        %984 = vmatprep.subr.mxu0 0.0
        %985 = vmatpush1.xpose.msra.mxu0 0.0
        %986 = vmatprep.mubr.f32.mxu0 0.0
        %987 = vmatmul.mubr.f32.gmra.mrb[0].mxu0 %v914
        %v988 = vpop.f32.mrb[0].mxu0
        %v989 = vadd.f32 %v911, %v988
        %v990 = vpop.f32.mrb[0].mxu0
        %991 = vdwg.mxu0
        %vm992 = vcmask 130048
        %v993 = vsel %vm992, %v989, -inf
        %994 = vmax.xlane.f32.xlu0 %v993
        %v995 = vpop.xlane.xlu0 %994
        %v996 = vsub.f32 %v989, %v995
        %v997 = vmul.f32 %v996, 1.442695
        %v998 = vpow.pop %v997
        %v999 = vsel %vm992, %v998, 0.0
        %1000 = vadd.xlane.f32.xlu0 %v999
        %v1001 = vpop.xlane.xlu0 %1000
        %v1002 = vrcp.pop %v1001
        %v1003 = vmul.f32 %v998, %v1002
        %v1005 = vsel %vm992, %v1003, 0
        %1007 = vmatprep.subr.mxu0 0.0
        %1008 = vmatpush1.msra.mxu0 %v625
        %1009 = vmatprep.subr.mxu0 0.0
        %1010 = vmatpush1.msra.mxu0 %v631
        %1011 = vmatprep.subr.mxu0 0.0
        %1012 = vmatpush1.msra.mxu0 0.0
        %1013 = vmatprep.subr.mxu0 0.0
        %1014 = vmatpush1.msra.mxu0 0.0
        %1015 = vmatprep.subr.mxu0 0.0
        %1016 = vmatpush1.msra.mxu0 0.0
        %1017 = vmatprep.subr.mxu0 0.0
        %1018 = vmatpush1.msra.mxu0 0.0
        %1019 = vmatprep.subr.mxu0 0.0
        %1020 = vmatpush1.msra.mxu0 0.0
        %1021 = vmatprep.subr.mxu0 0.0
        %1022 = vmatpush1.msra.mxu0 0.0
        %1023 = vmatprep.subr.mxu0 0.0
        %1024 = vmatpush1.msra.mxu0 0.0
        %1025 = vmatprep.subr.mxu0 0.0
        %1026 = vmatpush1.msra.mxu0 0.0
        %1027 = vmatprep.subr.mxu0 0.0
        %1028 = vmatpush1.msra.mxu0 0.0
        %1029 = vmatprep.subr.mxu0 0.0
        %1030 = vmatpush1.msra.mxu0 0.0
        %1031 = vmatprep.subr.mxu0 0.0
        %1032 = vmatpush1.msra.mxu0 0.0
        %1033 = vmatprep.subr.mxu0 0.0
        %1034 = vmatpush1.msra.mxu0 0.0
        %1035 = vmatprep.subr.mxu0 0.0
        %1036 = vmatpush1.msra.mxu0 0.0
        %1037 = vmatprep.subr.mxu0 0.0
        %1038 = vmatpush1.msra.mxu0 0.0
        %1039 = vmatprep.subr.mxu0 0.0
        %1040 = vmatpush1.msra.mxu0 0.0
        %1041 = vmatprep.subr.mxu0 0.0
        %1042 = vmatpush1.msra.mxu0 0.0
        %1043 = vmatprep.subr.mxu0 0.0
        %1044 = vmatpush1.msra.mxu0 0.0
        %1045 = vmatprep.subr.mxu0 0.0
        %1046 = vmatpush1.msra.mxu0 0.0
        %1047 = vmatprep.subr.mxu0 0.0
        %1048 = vmatpush1.msra.mxu0 0.0
        %1049 = vmatprep.subr.mxu0 0.0
        %1050 = vmatpush1.msra.mxu0 0.0
        %1051 = vmatprep.subr.mxu0 0.0
        %1052 = vmatpush1.msra.mxu0 0.0
        %1053 = vmatprep.subr.mxu0 0.0
        %1054 = vmatpush1.msra.mxu0 0.0
        %1055 = vmatprep.subr.mxu0 0.0
        %1056 = vmatpush1.msra.mxu0 0.0
        %1057 = vmatprep.subr.mxu0 0.0
        %1058 = vmatpush1.msra.mxu0 0.0
        %1059 = vmatprep.subr.mxu0 0.0
        %1060 = vmatpush1.msra.mxu0 0.0
        %1061 = vmatprep.subr.mxu0 0.0
        %1062 = vmatpush1.msra.mxu0 0.0
        %1063 = vmatprep.subr.mxu0 0.0
        %1064 = vmatpush1.msra.mxu0 0.0
        %1065 = vmatprep.subr.mxu0 0.0
        %1066 = vmatpush1.msra.mxu0 0.0
        %1067 = vmatprep.subr.mxu0 0.0
        %1068 = vmatpush1.msra.mxu0 0.0
        %1069 = vmatprep.subr.mxu0 0.0
        %1070 = vmatpush1.msra.mxu0 0.0
        %1071 = vmatprep.mubr.f32.mxu0 0.0
        %1072 = vmatmul.mubr.f32.gmra.mrb[0].mxu0 %v1005
        %v1073 = vpop.f32.mrb[0].mxu0
        %v1074 = vadd.f32 0.0, %v1073
        %v1075 = vpop.f32.mrb[0].mxu0
        %1076 = vdwg.mxu0
        %1077 = vrot.lane.b32.xlu0 %v907, 96
        %v1078 = vpop.permute.xlu0 %1077
        %1079 = vrot.lane.b32.xlu0 %v766, 96
        %v1080 = vpop.permute.xlu0 %1079
        %1081 = vrot.lane.b32.xlu0 %v772, 96
        %v1082 = vpop.permute.xlu0 %1081
        %v1083 = vsel %vm912, %v1078, 0
        %v1085 = vsel %vm912, %v1080, 0
        %v1087 = vsel %vm912, %v1082, 0
        %1089 = vmatprep.subr.mxu0 0.0
        %1090 = vmatpush1.xpose.msra.mxu0 %v1085
        %1091 = vmatprep.subr.mxu0 0.0
        %1092 = vmatpush1.xpose.msra.mxu0 %v1087
        %1093 = vmatprep.subr.mxu0 0.0
        %1094 = vmatpush1.xpose.msra.mxu0 0.0
        %1095 = vmatprep.subr.mxu0 0.0
        %1096 = vmatpush1.xpose.msra.mxu0 0.0
        %1097 = vmatprep.subr.mxu0 0.0
        %1098 = vmatpush1.xpose.msra.mxu0 0.0
        %1099 = vmatprep.subr.mxu0 0.0
        %1100 = vmatpush1.xpose.msra.mxu0 0.0
        %1101 = vmatprep.subr.mxu0 0.0
        %1102 = vmatpush1.xpose.msra.mxu0 0.0
        %1103 = vmatprep.subr.mxu0 0.0
        %1104 = vmatpush1.xpose.msra.mxu0 0.0
        %1105 = vmatprep.subr.mxu0 0.0
        %1106 = vmatpush1.xpose.msra.mxu0 0.0
        %1107 = vmatprep.subr.mxu0 0.0
        %1108 = vmatpush1.xpose.msra.mxu0 0.0
        %1109 = vmatprep.subr.mxu0 0.0
        %1110 = vmatpush1.xpose.msra.mxu0 0.0
        %1111 = vmatprep.subr.mxu0 0.0
        %1112 = vmatpush1.xpose.msra.mxu0 0.0
        %1113 = vmatprep.subr.mxu0 0.0
        %1114 = vmatpush1.xpose.msra.mxu0 0.0
        %1115 = vmatprep.subr.mxu0 0.0
        %1116 = vmatpush1.xpose.msra.mxu0 0.0
        %1117 = vmatprep.subr.mxu0 0.0
        %1118 = vmatpush1.xpose.msra.mxu0 0.0
        %1119 = vmatprep.subr.mxu0 0.0
        %1120 = vmatpush1.xpose.msra.mxu0 0.0
        %1121 = vmatprep.subr.mxu0 0.0
        %1122 = vmatpush1.xpose.msra.mxu0 0.0
        %1123 = vmatprep.subr.mxu0 0.0
        %1124 = vmatpush1.xpose.msra.mxu0 0.0
        %1125 = vmatprep.subr.mxu0 0.0
        %1126 = vmatpush1.xpose.msra.mxu0 0.0
        %1127 = vmatprep.subr.mxu0 0.0
        %1128 = vmatpush1.xpose.msra.mxu0 0.0
        %1129 = vmatprep.subr.mxu0 0.0
        %1130 = vmatpush1.xpose.msra.mxu0 0.0
        %1131 = vmatprep.subr.mxu0 0.0
        %1132 = vmatpush1.xpose.msra.mxu0 0.0
        %1133 = vmatprep.subr.mxu0 0.0
        %1134 = vmatpush1.xpose.msra.mxu0 0.0
        %1135 = vmatprep.subr.mxu0 0.0
        %1136 = vmatpush1.xpose.msra.mxu0 0.0
        %1137 = vmatprep.subr.mxu0 0.0
        %1138 = vmatpush1.xpose.msra.mxu0 0.0
        %1139 = vmatprep.subr.mxu0 0.0
        %1140 = vmatpush1.xpose.msra.mxu0 0.0
        %1141 = vmatprep.subr.mxu0 0.0
        %1142 = vmatpush1.xpose.msra.mxu0 0.0
        %1143 = vmatprep.subr.mxu0 0.0
        %1144 = vmatpush1.xpose.msra.mxu0 0.0
        %1145 = vmatprep.subr.mxu0 0.0
        %1146 = vmatpush1.xpose.msra.mxu0 0.0
        %1147 = vmatprep.subr.mxu0 0.0
        %1148 = vmatpush1.xpose.msra.mxu0 0.0
        %1149 = vmatprep.subr.mxu0 0.0
        %1150 = vmatpush1.xpose.msra.mxu0 0.0
        %1151 = vmatprep.subr.mxu0 0.0
        %1152 = vmatpush1.xpose.msra.mxu0 0.0
        %1153 = vmatprep.mubr.f32.mxu0 0.0
        %1154 = vmatmul.mubr.f32.gmra.mrb[0].mxu0 %v1083
        %v1155 = vpop.f32.mrb[0].mxu0
        %v1156 = vadd.f32 %v911, %v1155
        %v1157 = vpop.f32.mrb[0].mxu0
        %1158 = vdwg.mxu0
        %v1159 = vsel %vm992, %v1156, -inf
        %1160 = vmax.xlane.f32.xlu0 %v1159
        %v1161 = vpop.xlane.xlu0 %1160
        %v1162 = vsub.f32 %v1156, %v1161
        %v1163 = vmul.f32 %v1162, 1.442695
        %v1164 = vpow.pop %v1163
        %v1165 = vsel %vm992, %v1164, 0.0
        %1166 = vadd.xlane.f32.xlu0 %v1165
        %v1167 = vpop.xlane.xlu0 %1166
        %v1168 = vrcp.pop %v1167
        %v1169 = vmul.f32 %v1164, %v1168
        %1172 = vrot.lane.b32.xlu0 %v625, 96
        %v1173 = vpop.permute.xlu0 %1172
        %1174 = vrot.lane.b32.xlu0 %v631, 96
        %v1175 = vpop.permute.xlu0 %1174
        %v1179 = vsel %vm992, %v1169, 0
        %1181 = vmatprep.subr.mxu0 0.0
        %1182 = vmatpush1.msra.mxu0 %v1173
        %1183 = vmatprep.subr.mxu0 0.0
        %1184 = vmatpush1.msra.mxu0 %v1175
        %1185 = vmatprep.subr.mxu0 0.0
        %1186 = vmatpush1.msra.mxu0 0.0
        %1187 = vmatprep.subr.mxu0 0.0
        %1188 = vmatpush1.msra.mxu0 0.0
        %1189 = vmatprep.subr.mxu0 0.0
        %1190 = vmatpush1.msra.mxu0 0.0
        %1191 = vmatprep.subr.mxu0 0.0
        %1192 = vmatpush1.msra.mxu0 0.0
        %1193 = vmatprep.subr.mxu0 0.0
        %1194 = vmatpush1.msra.mxu0 0.0
        %1195 = vmatprep.subr.mxu0 0.0
        %1196 = vmatpush1.msra.mxu0 0.0
        %1197 = vmatprep.subr.mxu0 0.0
        %1198 = vmatpush1.msra.mxu0 0.0
        %1199 = vmatprep.subr.mxu0 0.0
        %1200 = vmatpush1.msra.mxu0 0.0
        %1201 = vmatprep.subr.mxu0 0.0
        %1202 = vmatpush1.msra.mxu0 0.0
        %1203 = vmatprep.subr.mxu0 0.0
        %1204 = vmatpush1.msra.mxu0 0.0
        %1205 = vmatprep.subr.mxu0 0.0
        %1206 = vmatpush1.msra.mxu0 0.0
        %1207 = vmatprep.subr.mxu0 0.0
        %1208 = vmatpush1.msra.mxu0 0.0
        %1209 = vmatprep.subr.mxu0 0.0
        %1210 = vmatpush1.msra.mxu0 0.0
        %1211 = vmatprep.subr.mxu0 0.0
        %1212 = vmatpush1.msra.mxu0 0.0
        %1213 = vmatprep.subr.mxu0 0.0
        %1214 = vmatpush1.msra.mxu0 0.0
        %1215 = vmatprep.subr.mxu0 0.0
        %1216 = vmatpush1.msra.mxu0 0.0
        %1217 = vmatprep.subr.mxu0 0.0
        %1218 = vmatpush1.msra.mxu0 0.0
        %1219 = vmatprep.subr.mxu0 0.0
        %1220 = vmatpush1.msra.mxu0 0.0
        %1221 = vmatprep.subr.mxu0 0.0
        %1222 = vmatpush1.msra.mxu0 0.0
        %1223 = vmatprep.subr.mxu0 0.0
        %1224 = vmatpush1.msra.mxu0 0.0
        %1225 = vmatprep.subr.mxu0 0.0
        %1226 = vmatpush1.msra.mxu0 0.0
        %1227 = vmatprep.subr.mxu0 0.0
        %1228 = vmatpush1.msra.mxu0 0.0
        %1229 = vmatprep.subr.mxu0 0.0
        %1230 = vmatpush1.msra.mxu0 0.0
        %1231 = vmatprep.subr.mxu0 0.0
        %1232 = vmatpush1.msra.mxu0 0.0
        %1233 = vmatprep.subr.mxu0 0.0
        %1234 = vmatpush1.msra.mxu0 0.0
        %1235 = vmatprep.subr.mxu0 0.0
        %1236 = vmatpush1.msra.mxu0 0.0
        %1237 = vmatprep.subr.mxu0 0.0
        %1238 = vmatpush1.msra.mxu0 0.0
        %1239 = vmatprep.subr.mxu0 0.0
        %1240 = vmatpush1.msra.mxu0 0.0
        %1241 = vmatprep.subr.mxu0 0.0
        %1242 = vmatpush1.msra.mxu0 0.0
        %1243 = vmatprep.subr.mxu0 0.0
        %1244 = vmatpush1.msra.mxu0 0.0
        %1245 = vmatprep.mubr.f32.mxu0 0.0
        %1246 = vmatmul.mubr.f32.gmra.mrb[0].mxu0 %v1179
        %v1247 = vpop.f32.mrb[0].mxu0
        %v1248 = vadd.f32 0.0, %v1247
        %v1249 = vpop.f32.mrb[0].mxu0
        %1250 = vdwg.mxu0
        %1251 = vrot.lane.b32.xlu0 %v907, 64
        %v1252 = vpop.permute.xlu0 %1251
        %1253 = vrot.lane.b32.xlu0 %v766, 64
        %v1254 = vpop.permute.xlu0 %1253
        %1255 = vrot.lane.b32.xlu0 %v772, 64
        %v1256 = vpop.permute.xlu0 %1255
        %v1257 = vsel %vm912, %v1252, 0
        %v1259 = vsel %vm912, %v1254, 0
        %v1261 = vsel %vm912, %v1256, 0
        %1263 = vmatprep.subr.mxu0 0.0
        %1264 = vmatpush1.xpose.msra.mxu0 %v1259
        %1265 = vmatprep.subr.mxu0 0.0
        %1266 = vmatpush1.xpose.msra.mxu0 %v1261
        %1267 = vmatprep.subr.mxu0 0.0
        %1268 = vmatpush1.xpose.msra.mxu0 0.0
        %1269 = vmatprep.subr.mxu0 0.0
        %1270 = vmatpush1.xpose.msra.mxu0 0.0
        %1271 = vmatprep.subr.mxu0 0.0
        %1272 = vmatpush1.xpose.msra.mxu0 0.0
        %1273 = vmatprep.subr.mxu0 0.0
        %1274 = vmatpush1.xpose.msra.mxu0 0.0
        %1275 = vmatprep.subr.mxu0 0.0
        %1276 = vmatpush1.xpose.msra.mxu0 0.0
        %1277 = vmatprep.subr.mxu0 0.0
        %1278 = vmatpush1.xpose.msra.mxu0 0.0
        %1279 = vmatprep.subr.mxu0 0.0
        %1280 = vmatpush1.xpose.msra.mxu0 0.0
        %1281 = vmatprep.subr.mxu0 0.0
        %1282 = vmatpush1.xpose.msra.mxu0 0.0
        %1283 = vmatprep.subr.mxu0 0.0
        %1284 = vmatpush1.xpose.msra.mxu0 0.0
        %1285 = vmatprep.subr.mxu0 0.0
        %1286 = vmatpush1.xpose.msra.mxu0 0.0
        %1287 = vmatprep.subr.mxu0 0.0
        %1288 = vmatpush1.xpose.msra.mxu0 0.0
        %1289 = vmatprep.subr.mxu0 0.0
        %1290 = vmatpush1.xpose.msra.mxu0 0.0
        %1291 = vmatprep.subr.mxu0 0.0
        %1292 = vmatpush1.xpose.msra.mxu0 0.0
        %1293 = vmatprep.subr.mxu0 0.0
        %1294 = vmatpush1.xpose.msra.mxu0 0.0
        %1295 = vmatprep.subr.mxu0 0.0
        %1296 = vmatpush1.xpose.msra.mxu0 0.0
        %1297 = vmatprep.subr.mxu0 0.0
        %1298 = vmatpush1.xpose.msra.mxu0 0.0
        %1299 = vmatprep.subr.mxu0 0.0
        %1300 = vmatpush1.xpose.msra.mxu0 0.0
        %1301 = vmatprep.subr.mxu0 0.0
        %1302 = vmatpush1.xpose.msra.mxu0 0.0
        %1303 = vmatprep.subr.mxu0 0.0
        %1304 = vmatpush1.xpose.msra.mxu0 0.0
        %1305 = vmatprep.subr.mxu0 0.0
        %1306 = vmatpush1.xpose.msra.mxu0 0.0
        %1307 = vmatprep.subr.mxu0 0.0
        %1308 = vmatpush1.xpose.msra.mxu0 0.0
        %1309 = vmatprep.subr.mxu0 0.0
        %1310 = vmatpush1.xpose.msra.mxu0 0.0
        %1311 = vmatprep.subr.mxu0 0.0
        %1312 = vmatpush1.xpose.msra.mxu0 0.0
        %1313 = vmatprep.subr.mxu0 0.0
        %1314 = vmatpush1.xpose.msra.mxu0 0.0
        %1315 = vmatprep.subr.mxu0 0.0
        %1316 = vmatpush1.xpose.msra.mxu0 0.0
        %1317 = vmatprep.subr.mxu0 0.0
        %1318 = vmatpush1.xpose.msra.mxu0 0.0
        %1319 = vmatprep.subr.mxu0 0.0
        %1320 = vmatpush1.xpose.msra.mxu0 0.0
        %1321 = vmatprep.subr.mxu0 0.0
        %1322 = vmatpush1.xpose.msra.mxu0 0.0
        %1323 = vmatprep.subr.mxu0 0.0
        %1324 = vmatpush1.xpose.msra.mxu0 0.0
        %1325 = vmatprep.subr.mxu0 0.0
        %1326 = vmatpush1.xpose.msra.mxu0 0.0
        %1327 = vmatprep.mubr.f32.mxu0 0.0
        %1328 = vmatmul.mubr.f32.gmra.mrb[0].mxu0 %v1257
        %v1329 = vpop.f32.mrb[0].mxu0
        %v1330 = vadd.f32 %v911, %v1329
        %v1331 = vpop.f32.mrb[0].mxu0
        %1332 = vdwg.mxu0
        %v1333 = vsel %vm992, %v1330, -inf
        %1334 = vmax.xlane.f32.xlu0 %v1333
        %v1335 = vpop.xlane.xlu0 %1334
        %v1336 = vsub.f32 %v1330, %v1335
        %v1337 = vmul.f32 %v1336, 1.442695
        %v1338 = vpow.pop %v1337
        %v1339 = vsel %vm992, %v1338, 0.0
        %1340 = vadd.xlane.f32.xlu0 %v1339
        %v1341 = vpop.xlane.xlu0 %1340
        %v1342 = vrcp.pop %v1341
        %v1343 = vmul.f32 %v1338, %v1342
        %1344 = vrot.lane.b32.xlu0 %v625, 64
        %v1345 = vpop.permute.xlu0 %1344
        %1346 = vrot.lane.b32.xlu0 %v631, 64
        %v1347 = vpop.permute.xlu0 %1346
        %v1351 = vsel %vm992, %v1343, 0
        %1353 = vmatprep.subr.mxu0 0.0
        %1354 = vmatpush1.msra.mxu0 %v1345
        %1355 = vmatprep.subr.mxu0 0.0
        %1356 = vmatpush1.msra.mxu0 %v1347
        %1357 = vmatprep.subr.mxu0 0.0
        %1358 = vmatpush1.msra.mxu0 0.0
        %1359 = vmatprep.subr.mxu0 0.0
        %1360 = vmatpush1.msra.mxu0 0.0
        %1361 = vmatprep.subr.mxu0 0.0
        %1362 = vmatpush1.msra.mxu0 0.0
        %1363 = vmatprep.subr.mxu0 0.0
        %1364 = vmatpush1.msra.mxu0 0.0
        %1365 = vmatprep.subr.mxu0 0.0
        %1366 = vmatpush1.msra.mxu0 0.0
        %1367 = vmatprep.subr.mxu0 0.0
        %1368 = vmatpush1.msra.mxu0 0.0
        %1369 = vmatprep.subr.mxu0 0.0
        %1370 = vmatpush1.msra.mxu0 0.0
        %1371 = vmatprep.subr.mxu0 0.0
        %1372 = vmatpush1.msra.mxu0 0.0
        %1373 = vmatprep.subr.mxu0 0.0
        %1374 = vmatpush1.msra.mxu0 0.0
        %1375 = vmatprep.subr.mxu0 0.0
        %1376 = vmatpush1.msra.mxu0 0.0
        %1377 = vmatprep.subr.mxu0 0.0
        %1378 = vmatpush1.msra.mxu0 0.0
        %1379 = vmatprep.subr.mxu0 0.0
        %1380 = vmatpush1.msra.mxu0 0.0
        %1381 = vmatprep.subr.mxu0 0.0
        %1382 = vmatpush1.msra.mxu0 0.0
        %1383 = vmatprep.subr.mxu0 0.0
        %1384 = vmatpush1.msra.mxu0 0.0
        %1385 = vmatprep.subr.mxu0 0.0
        %1386 = vmatpush1.msra.mxu0 0.0
        %1387 = vmatprep.subr.mxu0 0.0
        %1388 = vmatpush1.msra.mxu0 0.0
        %1389 = vmatprep.subr.mxu0 0.0
        %1390 = vmatpush1.msra.mxu0 0.0
        %1391 = vmatprep.subr.mxu0 0.0
        %1392 = vmatpush1.msra.mxu0 0.0
        %1393 = vmatprep.subr.mxu0 0.0
        %1394 = vmatpush1.msra.mxu0 0.0
        %1395 = vmatprep.subr.mxu0 0.0
        %1396 = vmatpush1.msra.mxu0 0.0
        %1397 = vmatprep.subr.mxu0 0.0
        %1398 = vmatpush1.msra.mxu0 0.0
        %1399 = vmatprep.subr.mxu0 0.0
        %1400 = vmatpush1.msra.mxu0 0.0
        %1401 = vmatprep.subr.mxu0 0.0
        %1402 = vmatpush1.msra.mxu0 0.0
        %1403 = vmatprep.subr.mxu0 0.0
        %1404 = vmatpush1.msra.mxu0 0.0
        %1405 = vmatprep.subr.mxu0 0.0
        %1406 = vmatpush1.msra.mxu0 0.0
        %1407 = vmatprep.subr.mxu0 0.0
        %1408 = vmatpush1.msra.mxu0 0.0
        %1409 = vmatprep.subr.mxu0 0.0
        %1410 = vmatpush1.msra.mxu0 0.0
        %1411 = vmatprep.subr.mxu0 0.0
        %1412 = vmatpush1.msra.mxu0 0.0
        %1413 = vmatprep.subr.mxu0 0.0
        %1414 = vmatpush1.msra.mxu0 0.0
        %1415 = vmatprep.subr.mxu0 0.0
        %1416 = vmatpush1.msra.mxu0 0.0
        %1417 = vmatprep.mubr.f32.mxu0 0.0
        %1418 = vmatmul.mubr.f32.gmra.mrb[0].mxu0 %v1351
        %v1419 = vpop.f32.mrb[0].mxu0
        %v1420 = vadd.f32 0.0, %v1419
        %v1421 = vpop.f32.mrb[0].mxu0
        %1422 = vdwg.mxu0
        %1423 = vrot.lane.b32.xlu0 %v907, 32
        %v1424 = vpop.permute.xlu0 %1423
        %1425 = vrot.lane.b32.xlu0 %v766, 32
        %v1426 = vpop.permute.xlu0 %1425
        %1427 = vrot.lane.b32.xlu0 %v772, 32
        %v1428 = vpop.permute.xlu0 %1427
        %v1429 = vsel %vm912, %v1424, 0
        %v1431 = vsel %vm912, %v1426, 0
        %v1433 = vsel %vm912, %v1428, 0
        %1435 = vmatprep.subr.mxu0 0.0
        %1436 = vmatpush1.xpose.msra.mxu0 %v1431
        %1437 = vmatprep.subr.mxu0 0.0
        %1438 = vmatpush1.xpose.msra.mxu0 %v1433
        %1439 = vmatprep.subr.mxu0 0.0
        %1440 = vmatpush1.xpose.msra.mxu0 0.0
        %1441 = vmatprep.subr.mxu0 0.0
        %1442 = vmatpush1.xpose.msra.mxu0 0.0
        %1443 = vmatprep.subr.mxu0 0.0
        %1444 = vmatpush1.xpose.msra.mxu0 0.0
        %1445 = vmatprep.subr.mxu0 0.0
        %1446 = vmatpush1.xpose.msra.mxu0 0.0
        %1447 = vmatprep.subr.mxu0 0.0
        %1448 = vmatpush1.xpose.msra.mxu0 0.0
        %1449 = vmatprep.subr.mxu0 0.0
        %1450 = vmatpush1.xpose.msra.mxu0 0.0
        %1451 = vmatprep.subr.mxu0 0.0
        %1452 = vmatpush1.xpose.msra.mxu0 0.0
        %1453 = vmatprep.subr.mxu0 0.0
        %1454 = vmatpush1.xpose.msra.mxu0 0.0
        %1455 = vmatprep.subr.mxu0 0.0
        %1456 = vmatpush1.xpose.msra.mxu0 0.0
        %1457 = vmatprep.subr.mxu0 0.0
        %1458 = vmatpush1.xpose.msra.mxu0 0.0
        %1459 = vmatprep.subr.mxu0 0.0
        %1460 = vmatpush1.xpose.msra.mxu0 0.0
        %1461 = vmatprep.subr.mxu0 0.0
        %1462 = vmatpush1.xpose.msra.mxu0 0.0
        %1463 = vmatprep.subr.mxu0 0.0
        %1464 = vmatpush1.xpose.msra.mxu0 0.0
        %1465 = vmatprep.subr.mxu0 0.0
        %1466 = vmatpush1.xpose.msra.mxu0 0.0
        %1467 = vmatprep.subr.mxu0 0.0
        %1468 = vmatpush1.xpose.msra.mxu0 0.0
        %1469 = vmatprep.subr.mxu0 0.0
        %1470 = vmatpush1.xpose.msra.mxu0 0.0
        %1471 = vmatprep.subr.mxu0 0.0
        %1472 = vmatpush1.xpose.msra.mxu0 0.0
        %1473 = vmatprep.subr.mxu0 0.0
        %1474 = vmatpush1.xpose.msra.mxu0 0.0
        %1475 = vmatprep.subr.mxu0 0.0
        %1476 = vmatpush1.xpose.msra.mxu0 0.0
        %1477 = vmatprep.subr.mxu0 0.0
        %1478 = vmatpush1.xpose.msra.mxu0 0.0
        %1479 = vmatprep.subr.mxu0 0.0
        %1480 = vmatpush1.xpose.msra.mxu0 0.0
        %1481 = vmatprep.subr.mxu0 0.0
        %1482 = vmatpush1.xpose.msra.mxu0 0.0
        %1483 = vmatprep.subr.mxu0 0.0
        %1484 = vmatpush1.xpose.msra.mxu0 0.0
        %1485 = vmatprep.subr.mxu0 0.0
        %1486 = vmatpush1.xpose.msra.mxu0 0.0
        %1487 = vmatprep.subr.mxu0 0.0
        %1488 = vmatpush1.xpose.msra.mxu0 0.0
        %1489 = vmatprep.subr.mxu0 0.0
        %1490 = vmatpush1.xpose.msra.mxu0 0.0
        %1491 = vmatprep.subr.mxu0 0.0
        %1492 = vmatpush1.xpose.msra.mxu0 0.0
        %1493 = vmatprep.subr.mxu0 0.0
        %1494 = vmatpush1.xpose.msra.mxu0 0.0
        %1495 = vmatprep.subr.mxu0 0.0
        %1496 = vmatpush1.xpose.msra.mxu0 0.0
        %1497 = vmatprep.subr.mxu0 0.0
        %1498 = vmatpush1.xpose.msra.mxu0 0.0
        %1499 = vmatprep.mubr.f32.mxu0 0.0
        %1500 = vmatmul.mubr.f32.gmra.mrb[0].mxu0 %v1429
        %v1501 = vpop.f32.mrb[0].mxu0
        %v1502 = vadd.f32 %v911, %v1501
        %v1503 = vpop.f32.mrb[0].mxu0
        %1504 = vdwg.mxu0
        %v1505 = vsel %vm992, %v1502, -inf
        %1506 = vmax.xlane.f32.xlu0 %v1505
        %v1507 = vpop.xlane.xlu0 %1506
        %v1508 = vsub.f32 %v1502, %v1507
        %v1509 = vmul.f32 %v1508, 1.442695
        %v1510 = vpow.pop %v1509
        %v1511 = vsel %vm992, %v1510, 0.0
        %1512 = vadd.xlane.f32.xlu0 %v1511
        %v1513 = vpop.xlane.xlu0 %1512
        %v1514 = vrcp.pop %v1513
        %v1515 = vmul.f32 %v1510, %v1514
        %1516 = vrot.lane.b32.xlu0 %v625, 32
        %v1517 = vpop.permute.xlu0 %1516
        %1518 = vrot.lane.b32.xlu0 %v631, 32
        %v1519 = vpop.permute.xlu0 %1518
        %v1523 = vsel %vm992, %v1515, 0
        %1525 = vmatprep.subr.mxu0 0.0
        %1526 = vmatpush1.msra.mxu0 %v1517
        %1527 = vmatprep.subr.mxu0 0.0
        %1528 = vmatpush1.msra.mxu0 %v1519
        %1529 = vmatprep.subr.mxu0 0.0
        %1530 = vmatpush1.msra.mxu0 0.0
        %1531 = vmatprep.subr.mxu0 0.0
        %1532 = vmatpush1.msra.mxu0 0.0
        %1533 = vmatprep.subr.mxu0 0.0
        %1534 = vmatpush1.msra.mxu0 0.0
        %1535 = vmatprep.subr.mxu0 0.0
        %1536 = vmatpush1.msra.mxu0 0.0
        %1537 = vmatprep.subr.mxu0 0.0
        %1538 = vmatpush1.msra.mxu0 0.0
        %1539 = vmatprep.subr.mxu0 0.0
        %1540 = vmatpush1.msra.mxu0 0.0
        %1541 = vmatprep.subr.mxu0 0.0
        %1542 = vmatpush1.msra.mxu0 0.0
        %1543 = vmatprep.subr.mxu0 0.0
        %1544 = vmatpush1.msra.mxu0 0.0
        %1545 = vmatprep.subr.mxu0 0.0
        %1546 = vmatpush1.msra.mxu0 0.0
        %1547 = vmatprep.subr.mxu0 0.0
        %1548 = vmatpush1.msra.mxu0 0.0
        %1549 = vmatprep.subr.mxu0 0.0
        %1550 = vmatpush1.msra.mxu0 0.0
        %1551 = vmatprep.subr.mxu0 0.0
        %1552 = vmatpush1.msra.mxu0 0.0
        %1553 = vmatprep.subr.mxu0 0.0
        %1554 = vmatpush1.msra.mxu0 0.0
        %1555 = vmatprep.subr.mxu0 0.0
        %1556 = vmatpush1.msra.mxu0 0.0
        %1557 = vmatprep.subr.mxu0 0.0
        %1558 = vmatpush1.msra.mxu0 0.0
        %1559 = vmatprep.subr.mxu0 0.0
        %1560 = vmatpush1.msra.mxu0 0.0
        %1561 = vmatprep.subr.mxu0 0.0
        %1562 = vmatpush1.msra.mxu0 0.0
        %1563 = vmatprep.subr.mxu0 0.0
        %1564 = vmatpush1.msra.mxu0 0.0
        %1565 = vmatprep.subr.mxu0 0.0
        %1566 = vmatpush1.msra.mxu0 0.0
        %1567 = vmatprep.subr.mxu0 0.0
        %1568 = vmatpush1.msra.mxu0 0.0
        %1569 = vmatprep.subr.mxu0 0.0
        %1570 = vmatpush1.msra.mxu0 0.0
        %1571 = vmatprep.subr.mxu0 0.0
        %1572 = vmatpush1.msra.mxu0 0.0
        %1573 = vmatprep.subr.mxu0 0.0
        %1574 = vmatpush1.msra.mxu0 0.0
        %1575 = vmatprep.subr.mxu0 0.0
        %1576 = vmatpush1.msra.mxu0 0.0
        %1577 = vmatprep.subr.mxu0 0.0
        %1578 = vmatpush1.msra.mxu0 0.0
        %1579 = vmatprep.subr.mxu0 0.0
        %1580 = vmatpush1.msra.mxu0 0.0
        %1581 = vmatprep.subr.mxu0 0.0
        %1582 = vmatpush1.msra.mxu0 0.0
        %1583 = vmatprep.subr.mxu0 0.0
        %1584 = vmatpush1.msra.mxu0 0.0
        %1585 = vmatprep.subr.mxu0 0.0
        %1586 = vmatpush1.msra.mxu0 0.0
        %1587 = vmatprep.subr.mxu0 0.0
        %1588 = vmatpush1.msra.mxu0 0.0
        %1589 = vmatprep.mubr.f32.mxu0 0.0
        %1590 = vmatmul.mubr.f32.gmra.mrb[0].mxu0 %v1523
        %v1591 = vpop.f32.mrb[0].mxu0
        %v1592 = vadd.f32 0.0, %v1591
        %v1593 = vpop.f32.mrb[0].mxu0
        %1594 = vdwg.mxu0
        %v1596 = vsel %vm912, %v909, 0
        %v1599 = vsel %vm912, %v768, 0
        %v1602 = vsel %vm912, %v774, 0
        %1604 = vmatprep.subr.mxu0 0.0
        %1605 = vmatpush1.xpose.msra.mxu0 %v1599
        %1606 = vmatprep.subr.mxu0 0.0
        %1607 = vmatpush1.xpose.msra.mxu0 %v1602
        %1608 = vmatprep.subr.mxu0 0.0
        %1609 = vmatpush1.xpose.msra.mxu0 0.0
        %1610 = vmatprep.subr.mxu0 0.0
        %1611 = vmatpush1.xpose.msra.mxu0 0.0
        %1612 = vmatprep.subr.mxu0 0.0
        %1613 = vmatpush1.xpose.msra.mxu0 0.0
        %1614 = vmatprep.subr.mxu0 0.0
        %1615 = vmatpush1.xpose.msra.mxu0 0.0
        %1616 = vmatprep.subr.mxu0 0.0
        %1617 = vmatpush1.xpose.msra.mxu0 0.0
        %1618 = vmatprep.subr.mxu0 0.0
        %1619 = vmatpush1.xpose.msra.mxu0 0.0
        %1620 = vmatprep.subr.mxu0 0.0
        %1621 = vmatpush1.xpose.msra.mxu0 0.0
        %1622 = vmatprep.subr.mxu0 0.0
        %1623 = vmatpush1.xpose.msra.mxu0 0.0
        %1624 = vmatprep.subr.mxu0 0.0
        %1625 = vmatpush1.xpose.msra.mxu0 0.0
        %1626 = vmatprep.subr.mxu0 0.0
        %1627 = vmatpush1.xpose.msra.mxu0 0.0
        %1628 = vmatprep.subr.mxu0 0.0
        %1629 = vmatpush1.xpose.msra.mxu0 0.0
        %1630 = vmatprep.subr.mxu0 0.0
        %1631 = vmatpush1.xpose.msra.mxu0 0.0
        %1632 = vmatprep.subr.mxu0 0.0
        %1633 = vmatpush1.xpose.msra.mxu0 0.0
        %1634 = vmatprep.subr.mxu0 0.0
        %1635 = vmatpush1.xpose.msra.mxu0 0.0
        %1636 = vmatprep.subr.mxu0 0.0
        %1637 = vmatpush1.xpose.msra.mxu0 0.0
        %1638 = vmatprep.subr.mxu0 0.0
        %1639 = vmatpush1.xpose.msra.mxu0 0.0
        %1640 = vmatprep.subr.mxu0 0.0
        %1641 = vmatpush1.xpose.msra.mxu0 0.0
        %1642 = vmatprep.subr.mxu0 0.0
        %1643 = vmatpush1.xpose.msra.mxu0 0.0
        %1644 = vmatprep.subr.mxu0 0.0
        %1645 = vmatpush1.xpose.msra.mxu0 0.0
        %1646 = vmatprep.subr.mxu0 0.0
        %1647 = vmatpush1.xpose.msra.mxu0 0.0
        %1648 = vmatprep.subr.mxu0 0.0
        %1649 = vmatpush1.xpose.msra.mxu0 0.0
        %1650 = vmatprep.subr.mxu0 0.0
        %1651 = vmatpush1.xpose.msra.mxu0 0.0
        %1652 = vmatprep.subr.mxu0 0.0
        %1653 = vmatpush1.xpose.msra.mxu0 0.0
        %1654 = vmatprep.subr.mxu0 0.0
        %1655 = vmatpush1.xpose.msra.mxu0 0.0
        %1656 = vmatprep.subr.mxu0 0.0
        %1657 = vmatpush1.xpose.msra.mxu0 0.0
        %1658 = vmatprep.subr.mxu0 0.0
        %1659 = vmatpush1.xpose.msra.mxu0 0.0
        %1660 = vmatprep.subr.mxu0 0.0
        %1661 = vmatpush1.xpose.msra.mxu0 0.0
        %1662 = vmatprep.subr.mxu0 0.0
        %1663 = vmatpush1.xpose.msra.mxu0 0.0
        %1664 = vmatprep.subr.mxu0 0.0
        %1665 = vmatpush1.xpose.msra.mxu0 0.0
        %1666 = vmatprep.subr.mxu0 0.0
        %1667 = vmatpush1.xpose.msra.mxu0 0.0
        %1668 = vmatprep.mubr.f32.mxu0 0.0
        %1669 = vmatmul.mubr.f32.gmra.mrb[0].mxu0 %v1596
        %v1670 = vpop.f32.mrb[0].mxu0
        %v1671 = vadd.f32 %v911, %v1670
        %v1672 = vpop.f32.mrb[0].mxu0
        %1673 = vdwg.mxu0
        %v1674 = vsel %vm992, %v1671, -inf
        %1675 = vmax.xlane.f32.xlu0 %v1674
        %v1676 = vpop.xlane.xlu0 %1675
        %v1677 = vsub.f32 %v1671, %v1676
        %v1678 = vmul.f32 %v1677, 1.442695
        %v1679 = vpow.pop %v1678
        %v1680 = vsel %vm992, %v1679, 0.0
        %1681 = vadd.xlane.f32.xlu0 %v1680
        %v1682 = vpop.xlane.xlu0 %1681
        %v1683 = vrcp.pop %v1682
        %v1684 = vmul.f32 %v1679, %v1683
        %v1686 = vsel %vm992, %v1684, 0
        %1688 = vmatprep.subr.mxu0 0.0
        %1689 = vmatpush1.msra.mxu0 %v627
        %1690 = vmatprep.subr.mxu0 0.0
        %1691 = vmatpush1.msra.mxu0 %v633
        %1692 = vmatprep.subr.mxu0 0.0
        %1693 = vmatpush1.msra.mxu0 0.0
        %1694 = vmatprep.subr.mxu0 0.0
        %1695 = vmatpush1.msra.mxu0 0.0
        %1696 = vmatprep.subr.mxu0 0.0
        %1697 = vmatpush1.msra.mxu0 0.0
        %1698 = vmatprep.subr.mxu0 0.0
        %1699 = vmatpush1.msra.mxu0 0.0
        %1700 = vmatprep.subr.mxu0 0.0
        %1701 = vmatpush1.msra.mxu0 0.0
        %1702 = vmatprep.subr.mxu0 0.0
        %1703 = vmatpush1.msra.mxu0 0.0
        %1704 = vmatprep.subr.mxu0 0.0
        %1705 = vmatpush1.msra.mxu0 0.0
        %1706 = vmatprep.subr.mxu0 0.0
        %1707 = vmatpush1.msra.mxu0 0.0
        %1708 = vmatprep.subr.mxu0 0.0
        %1709 = vmatpush1.msra.mxu0 0.0
        %1710 = vmatprep.subr.mxu0 0.0
        %1711 = vmatpush1.msra.mxu0 0.0
        %1712 = vmatprep.subr.mxu0 0.0
        %1713 = vmatpush1.msra.mxu0 0.0
        %1714 = vmatprep.subr.mxu0 0.0
        %1715 = vmatpush1.msra.mxu0 0.0
        %1716 = vmatprep.subr.mxu0 0.0
        %1717 = vmatpush1.msra.mxu0 0.0
        %1718 = vmatprep.subr.mxu0 0.0
        %1719 = vmatpush1.msra.mxu0 0.0
        %1720 = vmatprep.subr.mxu0 0.0
        %1721 = vmatpush1.msra.mxu0 0.0
        %1722 = vmatprep.subr.mxu0 0.0
        %1723 = vmatpush1.msra.mxu0 0.0
        %1724 = vmatprep.subr.mxu0 0.0
        %1725 = vmatpush1.msra.mxu0 0.0
        %1726 = vmatprep.subr.mxu0 0.0
        %1727 = vmatpush1.msra.mxu0 0.0
        %1728 = vmatprep.subr.mxu0 0.0
        %1729 = vmatpush1.msra.mxu0 0.0
        %1730 = vmatprep.subr.mxu0 0.0
        %1731 = vmatpush1.msra.mxu0 0.0
        %1732 = vmatprep.subr.mxu0 0.0
        %1733 = vmatpush1.msra.mxu0 0.0
        %1734 = vmatprep.subr.mxu0 0.0
        %1735 = vmatpush1.msra.mxu0 0.0
        %1736 = vmatprep.subr.mxu0 0.0
        %1737 = vmatpush1.msra.mxu0 0.0
        %1738 = vmatprep.subr.mxu0 0.0
        %1739 = vmatpush1.msra.mxu0 0.0
        %1740 = vmatprep.subr.mxu0 0.0
        %1741 = vmatpush1.msra.mxu0 0.0
        %1742 = vmatprep.subr.mxu0 0.0
        %1743 = vmatpush1.msra.mxu0 0.0
        %1744 = vmatprep.subr.mxu0 0.0
        %1745 = vmatpush1.msra.mxu0 0.0
        %1746 = vmatprep.subr.mxu0 0.0
        %1747 = vmatpush1.msra.mxu0 0.0
        %1748 = vmatprep.subr.mxu0 0.0
        %1749 = vmatpush1.msra.mxu0 0.0
        %1750 = vmatprep.subr.mxu0 0.0
        %1751 = vmatpush1.msra.mxu0 0.0
        %1752 = vmatprep.mubr.f32.mxu0 0.0
        %1753 = vmatmul.mubr.f32.gmra.mrb[0].mxu0 %v1686
        %v1754 = vpop.f32.mrb[0].mxu0
        %v1755 = vadd.f32 0.0, %v1754
        %v1756 = vpop.f32.mrb[0].mxu0
        %1757 = vdwg.mxu0
        %1758 = vrot.lane.b32.xlu0 %v909, 96
        %v1759 = vpop.permute.xlu0 %1758
        %1760 = vrot.lane.b32.xlu0 %v768, 96
        %v1761 = vpop.permute.xlu0 %1760
        %1762 = vrot.lane.b32.xlu0 %v774, 96
        %v1763 = vpop.permute.xlu0 %1762
        %v1764 = vsel %vm912, %v1759, 0
        %v1766 = vsel %vm912, %v1761, 0
        %v1768 = vsel %vm912, %v1763, 0
        %1770 = vmatprep.subr.mxu0 0.0
        %1771 = vmatpush1.xpose.msra.mxu0 %v1766
        %1772 = vmatprep.subr.mxu0 0.0
        %1773 = vmatpush1.xpose.msra.mxu0 %v1768
        %1774 = vmatprep.subr.mxu0 0.0
        %1775 = vmatpush1.xpose.msra.mxu0 0.0
        %1776 = vmatprep.subr.mxu0 0.0
        %1777 = vmatpush1.xpose.msra.mxu0 0.0
        %1778 = vmatprep.subr.mxu0 0.0
        %1779 = vmatpush1.xpose.msra.mxu0 0.0
        %1780 = vmatprep.subr.mxu0 0.0
        %1781 = vmatpush1.xpose.msra.mxu0 0.0
        %1782 = vmatprep.subr.mxu0 0.0
        %1783 = vmatpush1.xpose.msra.mxu0 0.0
        %1784 = vmatprep.subr.mxu0 0.0
        %1785 = vmatpush1.xpose.msra.mxu0 0.0
        %1786 = vmatprep.subr.mxu0 0.0
        %1787 = vmatpush1.xpose.msra.mxu0 0.0
        %1788 = vmatprep.subr.mxu0 0.0
        %1789 = vmatpush1.xpose.msra.mxu0 0.0
        %1790 = vmatprep.subr.mxu0 0.0
        %1791 = vmatpush1.xpose.msra.mxu0 0.0
        %1792 = vmatprep.subr.mxu0 0.0
        %1793 = vmatpush1.xpose.msra.mxu0 0.0
        %1794 = vmatprep.subr.mxu0 0.0
        %1795 = vmatpush1.xpose.msra.mxu0 0.0
        %1796 = vmatprep.subr.mxu0 0.0
        %1797 = vmatpush1.xpose.msra.mxu0 0.0
        %1798 = vmatprep.subr.mxu0 0.0
        %1799 = vmatpush1.xpose.msra.mxu0 0.0
        %1800 = vmatprep.subr.mxu0 0.0
        %1801 = vmatpush1.xpose.msra.mxu0 0.0
        %1802 = vmatprep.subr.mxu0 0.0
        %1803 = vmatpush1.xpose.msra.mxu0 0.0
        %1804 = vmatprep.subr.mxu0 0.0
        %1805 = vmatpush1.xpose.msra.mxu0 0.0
        %1806 = vmatprep.subr.mxu0 0.0
        %1807 = vmatpush1.xpose.msra.mxu0 0.0
        %1808 = vmatprep.subr.mxu0 0.0
        %1809 = vmatpush1.xpose.msra.mxu0 0.0
        %1810 = vmatprep.subr.mxu0 0.0
        %1811 = vmatpush1.xpose.msra.mxu0 0.0
        %1812 = vmatprep.subr.mxu0 0.0
        %1813 = vmatpush1.xpose.msra.mxu0 0.0
        %1814 = vmatprep.subr.mxu0 0.0
        %1815 = vmatpush1.xpose.msra.mxu0 0.0
        %1816 = vmatprep.subr.mxu0 0.0
        %1817 = vmatpush1.xpose.msra.mxu0 0.0
        %1818 = vmatprep.subr.mxu0 0.0
        %1819 = vmatpush1.xpose.msra.mxu0 0.0
        %1820 = vmatprep.subr.mxu0 0.0
        %1821 = vmatpush1.xpose.msra.mxu0 0.0
        %1822 = vmatprep.subr.mxu0 0.0
        %1823 = vmatpush1.xpose.msra.mxu0 0.0
        %1824 = vmatprep.subr.mxu0 0.0
        %1825 = vmatpush1.xpose.msra.mxu0 0.0
        %1826 = vmatprep.subr.mxu0 0.0
        %1827 = vmatpush1.xpose.msra.mxu0 0.0
        %1828 = vmatprep.subr.mxu0 0.0
        %1829 = vmatpush1.xpose.msra.mxu0 0.0
        %1830 = vmatprep.subr.mxu0 0.0
        %1831 = vmatpush1.xpose.msra.mxu0 0.0
        %1832 = vmatprep.subr.mxu0 0.0
        %1833 = vmatpush1.xpose.msra.mxu0 0.0
        %1834 = vmatprep.mubr.f32.mxu0 0.0
        %1835 = vmatmul.mubr.f32.gmra.mrb[0].mxu0 %v1764
        %v1836 = vpop.f32.mrb[0].mxu0
        %v1837 = vadd.f32 %v911, %v1836
        %v1838 = vpop.f32.mrb[0].mxu0
        %1839 = vdwg.mxu0
        %v1840 = vsel %vm992, %v1837, -inf
        %1841 = vmax.xlane.f32.xlu0 %v1840
        %v1842 = vpop.xlane.xlu0 %1841
        %v1843 = vsub.f32 %v1837, %v1842
        %v1844 = vmul.f32 %v1843, 1.442695
        %v1845 = vpow.pop %v1844
        %v1846 = vsel %vm992, %v1845, 0.0
        %1847 = vadd.xlane.f32.xlu0 %v1846
        %v1848 = vpop.xlane.xlu0 %1847
        %v1849 = vrcp.pop %v1848
        %v1850 = vmul.f32 %v1845, %v1849
        %1853 = vrot.lane.b32.xlu0 %v627, 96
        %v1854 = vpop.permute.xlu0 %1853
        %1855 = vrot.lane.b32.xlu0 %v633, 96
        %v1856 = vpop.permute.xlu0 %1855
        %v1860 = vsel %vm992, %v1850, 0
        %1862 = vmatprep.subr.mxu0 0.0
        %1863 = vmatpush1.msra.mxu0 %v1854
        %1864 = vmatprep.subr.mxu0 0.0
        %1865 = vmatpush1.msra.mxu0 %v1856
        %1866 = vmatprep.subr.mxu0 0.0
        %1867 = vmatpush1.msra.mxu0 0.0
        %1868 = vmatprep.subr.mxu0 0.0
        %1869 = vmatpush1.msra.mxu0 0.0
        %1870 = vmatprep.subr.mxu0 0.0
        %1871 = vmatpush1.msra.mxu0 0.0
        %1872 = vmatprep.subr.mxu0 0.0
        %1873 = vmatpush1.msra.mxu0 0.0
        %1874 = vmatprep.subr.mxu0 0.0
        %1875 = vmatpush1.msra.mxu0 0.0
        %1876 = vmatprep.subr.mxu0 0.0
        %1877 = vmatpush1.msra.mxu0 0.0
        %1878 = vmatprep.subr.mxu0 0.0
        %1879 = vmatpush1.msra.mxu0 0.0
        %1880 = vmatprep.subr.mxu0 0.0
        %1881 = vmatpush1.msra.mxu0 0.0
        %1882 = vmatprep.subr.mxu0 0.0
        %1883 = vmatpush1.msra.mxu0 0.0
        %1884 = vmatprep.subr.mxu0 0.0
        %1885 = vmatpush1.msra.mxu0 0.0
        %1886 = vmatprep.subr.mxu0 0.0
        %1887 = vmatpush1.msra.mxu0 0.0
        %1888 = vmatprep.subr.mxu0 0.0
        %1889 = vmatpush1.msra.mxu0 0.0
        %1890 = vmatprep.subr.mxu0 0.0
        %1891 = vmatpush1.msra.mxu0 0.0
        %1892 = vmatprep.subr.mxu0 0.0
        %1893 = vmatpush1.msra.mxu0 0.0
        %1894 = vmatprep.subr.mxu0 0.0
        %1895 = vmatpush1.msra.mxu0 0.0
        %1896 = vmatprep.subr.mxu0 0.0
        %1897 = vmatpush1.msra.mxu0 0.0
        %1898 = vmatprep.subr.mxu0 0.0
        %1899 = vmatpush1.msra.mxu0 0.0
        %1900 = vmatprep.subr.mxu0 0.0
        %1901 = vmatpush1.msra.mxu0 0.0
        %1902 = vmatprep.subr.mxu0 0.0
        %1903 = vmatpush1.msra.mxu0 0.0
        %1904 = vmatprep.subr.mxu0 0.0
        %1905 = vmatpush1.msra.mxu0 0.0
        %1906 = vmatprep.subr.mxu0 0.0
        %1907 = vmatpush1.msra.mxu0 0.0
        %1908 = vmatprep.subr.mxu0 0.0
        %1909 = vmatpush1.msra.mxu0 0.0
        %1910 = vmatprep.subr.mxu0 0.0
        %1911 = vmatpush1.msra.mxu0 0.0
        %1912 = vmatprep.subr.mxu0 0.0
        %1913 = vmatpush1.msra.mxu0 0.0
        %1914 = vmatprep.subr.mxu0 0.0
        %1915 = vmatpush1.msra.mxu0 0.0
        %1916 = vmatprep.subr.mxu0 0.0
        %1917 = vmatpush1.msra.mxu0 0.0
        %1918 = vmatprep.subr.mxu0 0.0
        %1919 = vmatpush1.msra.mxu0 0.0
        %1920 = vmatprep.subr.mxu0 0.0
        %1921 = vmatpush1.msra.mxu0 0.0
        %1922 = vmatprep.subr.mxu0 0.0
        %1923 = vmatpush1.msra.mxu0 0.0
        %1924 = vmatprep.subr.mxu0 0.0
        %1925 = vmatpush1.msra.mxu0 0.0
        %1926 = vmatprep.mubr.f32.mxu0 0.0
        %1927 = vmatmul.mubr.f32.gmra.mrb[0].mxu0 %v1860
        %v1928 = vpop.f32.mrb[0].mxu0
        %v1929 = vadd.f32 0.0, %v1928
        %v1930 = vpop.f32.mrb[0].mxu0
        %1931 = vdwg.mxu0
        %1932 = vrot.lane.b32.xlu0 %v909, 64
        %v1933 = vpop.permute.xlu0 %1932
        %1934 = vrot.lane.b32.xlu0 %v768, 64
        %v1935 = vpop.permute.xlu0 %1934
        %1936 = vrot.lane.b32.xlu0 %v774, 64
        %v1937 = vpop.permute.xlu0 %1936
        %v1938 = vsel %vm912, %v1933, 0
        %v1940 = vsel %vm912, %v1935, 0
        %v1942 = vsel %vm912, %v1937, 0
        %1944 = vmatprep.subr.mxu0 0.0
        %1945 = vmatpush1.xpose.msra.mxu0 %v1940
        %1946 = vmatprep.subr.mxu0 0.0
        %1947 = vmatpush1.xpose.msra.mxu0 %v1942
        %1948 = vmatprep.subr.mxu0 0.0
        %1949 = vmatpush1.xpose.msra.mxu0 0.0
        %1950 = vmatprep.subr.mxu0 0.0
        %1951 = vmatpush1.xpose.msra.mxu0 0.0
        %1952 = vmatprep.subr.mxu0 0.0
        %1953 = vmatpush1.xpose.msra.mxu0 0.0
        %1954 = vmatprep.subr.mxu0 0.0
        %1955 = vmatpush1.xpose.msra.mxu0 0.0
        %1956 = vmatprep.subr.mxu0 0.0
        %1957 = vmatpush1.xpose.msra.mxu0 0.0
        %1958 = vmatprep.subr.mxu0 0.0
        %1959 = vmatpush1.xpose.msra.mxu0 0.0
        %1960 = vmatprep.subr.mxu0 0.0
        %1961 = vmatpush1.xpose.msra.mxu0 0.0
        %1962 = vmatprep.subr.mxu0 0.0
        %1963 = vmatpush1.xpose.msra.mxu0 0.0
        %1964 = vmatprep.subr.mxu0 0.0
        %1965 = vmatpush1.xpose.msra.mxu0 0.0
        %1966 = vmatprep.subr.mxu0 0.0
        %1967 = vmatpush1.xpose.msra.mxu0 0.0
        %1968 = vmatprep.subr.mxu0 0.0
        %1969 = vmatpush1.xpose.msra.mxu0 0.0
        %1970 = vmatprep.subr.mxu0 0.0
        %1971 = vmatpush1.xpose.msra.mxu0 0.0
        %1972 = vmatprep.subr.mxu0 0.0
        %1973 = vmatpush1.xpose.msra.mxu0 0.0
        %1974 = vmatprep.subr.mxu0 0.0
        %1975 = vmatpush1.xpose.msra.mxu0 0.0
        %1976 = vmatprep.subr.mxu0 0.0
        %1977 = vmatpush1.xpose.msra.mxu0 0.0
        %1978 = vmatprep.subr.mxu0 0.0
        %1979 = vmatpush1.xpose.msra.mxu0 0.0
        %1980 = vmatprep.subr.mxu0 0.0
        %1981 = vmatpush1.xpose.msra.mxu0 0.0
        %1982 = vmatprep.subr.mxu0 0.0
        %1983 = vmatpush1.xpose.msra.mxu0 0.0
        %1984 = vmatprep.subr.mxu0 0.0
        %1985 = vmatpush1.xpose.msra.mxu0 0.0
        %1986 = vmatprep.subr.mxu0 0.0
        %1987 = vmatpush1.xpose.msra.mxu0 0.0
        %1988 = vmatprep.subr.mxu0 0.0
        %1989 = vmatpush1.xpose.msra.mxu0 0.0
        %1990 = vmatprep.subr.mxu0 0.0
        %1991 = vmatpush1.xpose.msra.mxu0 0.0
        %1992 = vmatprep.subr.mxu0 0.0
        %1993 = vmatpush1.xpose.msra.mxu0 0.0
        %1994 = vmatprep.subr.mxu0 0.0
        %1995 = vmatpush1.xpose.msra.mxu0 0.0
        %1996 = vmatprep.subr.mxu0 0.0
        %1997 = vmatpush1.xpose.msra.mxu0 0.0
        %1998 = vmatprep.subr.mxu0 0.0
        %1999 = vmatpush1.xpose.msra.mxu0 0.0
        %2000 = vmatprep.subr.mxu0 0.0
        %2001 = vmatpush1.xpose.msra.mxu0 0.0
        %2002 = vmatprep.subr.mxu0 0.0
        %2003 = vmatpush1.xpose.msra.mxu0 0.0
        %2004 = vmatprep.subr.mxu0 0.0
        %2005 = vmatpush1.xpose.msra.mxu0 0.0
        %2006 = vmatprep.subr.mxu0 0.0
        %2007 = vmatpush1.xpose.msra.mxu0 0.0
        %2008 = vmatprep.mubr.f32.mxu0 0.0
        %2009 = vmatmul.mubr.f32.gmra.mrb[0].mxu0 %v1938
        %v2010 = vpop.f32.mrb[0].mxu0
        %v2011 = vadd.f32 %v911, %v2010
        %v2012 = vpop.f32.mrb[0].mxu0
        %2013 = vdwg.mxu0
        %v2014 = vsel %vm992, %v2011, -inf
        %2015 = vmax.xlane.f32.xlu0 %v2014
        %v2016 = vpop.xlane.xlu0 %2015
        %v2017 = vsub.f32 %v2011, %v2016
        %v2018 = vmul.f32 %v2017, 1.442695
        %v2019 = vpow.pop %v2018
        %v2020 = vsel %vm992, %v2019, 0.0
        %2021 = vadd.xlane.f32.xlu0 %v2020
        %v2022 = vpop.xlane.xlu0 %2021
        %v2023 = vrcp.pop %v2022
        %v2024 = vmul.f32 %v2019, %v2023
        %2025 = vrot.lane.b32.xlu0 %v627, 64
        %v2026 = vpop.permute.xlu0 %2025
        %2027 = vrot.lane.b32.xlu0 %v633, 64
        %v2028 = vpop.permute.xlu0 %2027
        %v2032 = vsel %vm992, %v2024, 0
        %2034 = vmatprep.subr.mxu0 0.0
        %2035 = vmatpush1.msra.mxu0 %v2026
        %2036 = vmatprep.subr.mxu0 0.0
        %2037 = vmatpush1.msra.mxu0 %v2028
        %2038 = vmatprep.subr.mxu0 0.0
        %2039 = vmatpush1.msra.mxu0 0.0
        %2040 = vmatprep.subr.mxu0 0.0
        %2041 = vmatpush1.msra.mxu0 0.0
        %2042 = vmatprep.subr.mxu0 0.0
        %2043 = vmatpush1.msra.mxu0 0.0
        %2044 = vmatprep.subr.mxu0 0.0
        %2045 = vmatpush1.msra.mxu0 0.0
        %2046 = vmatprep.subr.mxu0 0.0
        %2047 = vmatpush1.msra.mxu0 0.0
        %2048 = vmatprep.subr.mxu0 0.0
        %2049 = vmatpush1.msra.mxu0 0.0
        %2050 = vmatprep.subr.mxu0 0.0
        %2051 = vmatpush1.msra.mxu0 0.0
        %2052 = vmatprep.subr.mxu0 0.0
        %2053 = vmatpush1.msra.mxu0 0.0
        %2054 = vmatprep.subr.mxu0 0.0
        %2055 = vmatpush1.msra.mxu0 0.0
        %2056 = vmatprep.subr.mxu0 0.0
        %2057 = vmatpush1.msra.mxu0 0.0
        %2058 = vmatprep.subr.mxu0 0.0
        %2059 = vmatpush1.msra.mxu0 0.0
        %2060 = vmatprep.subr.mxu0 0.0
        %2061 = vmatpush1.msra.mxu0 0.0
        %2062 = vmatprep.subr.mxu0 0.0
        %2063 = vmatpush1.msra.mxu0 0.0
        %2064 = vmatprep.subr.mxu0 0.0
        %2065 = vmatpush1.msra.mxu0 0.0
        %2066 = vmatprep.subr.mxu0 0.0
        %2067 = vmatpush1.msra.mxu0 0.0
        %2068 = vmatprep.subr.mxu0 0.0
        %2069 = vmatpush1.msra.mxu0 0.0
        %2070 = vmatprep.subr.mxu0 0.0
        %2071 = vmatpush1.msra.mxu0 0.0
        %2072 = vmatprep.subr.mxu0 0.0
        %2073 = vmatpush1.msra.mxu0 0.0
        %2074 = vmatprep.subr.mxu0 0.0
        %2075 = vmatpush1.msra.mxu0 0.0
        %2076 = vmatprep.subr.mxu0 0.0
        %2077 = vmatpush1.msra.mxu0 0.0
        %2078 = vmatprep.subr.mxu0 0.0
        %2079 = vmatpush1.msra.mxu0 0.0
        %2080 = vmatprep.subr.mxu0 0.0
        %2081 = vmatpush1.msra.mxu0 0.0
        %2082 = vmatprep.subr.mxu0 0.0
        %2083 = vmatpush1.msra.mxu0 0.0
        %2084 = vmatprep.subr.mxu0 0.0
        %2085 = vmatpush1.msra.mxu0 0.0
        %2086 = vmatprep.subr.mxu0 0.0
        %2087 = vmatpush1.msra.mxu0 0.0
        %2088 = vmatprep.subr.mxu0 0.0
        %2089 = vmatpush1.msra.mxu0 0.0
        %2090 = vmatprep.subr.mxu0 0.0
        %2091 = vmatpush1.msra.mxu0 0.0
        %2092 = vmatprep.subr.mxu0 0.0
        %2093 = vmatpush1.msra.mxu0 0.0
        %2094 = vmatprep.subr.mxu0 0.0
        %2095 = vmatpush1.msra.mxu0 0.0
        %2096 = vmatprep.subr.mxu0 0.0
        %2097 = vmatpush1.msra.mxu0 0.0
        %2098 = vmatprep.mubr.f32.mxu0 0.0
        %2099 = vmatmul.mubr.f32.gmra.mrb[0].mxu0 %v2032
        %v2100 = vpop.f32.mrb[0].mxu0
        %v2101 = vadd.f32 0.0, %v2100
        %v2102 = vpop.f32.mrb[0].mxu0
        %2103 = vdwg.mxu0
        %2104 = vrot.lane.b32.xlu0 %v909, 32
        %v2105 = vpop.permute.xlu0 %2104
        %2106 = vrot.lane.b32.xlu0 %v768, 32
        %v2107 = vpop.permute.xlu0 %2106
        %2108 = vrot.lane.b32.xlu0 %v774, 32
        %v2109 = vpop.permute.xlu0 %2108
        %v2110 = vsel %vm912, %v2105, 0
        %v2112 = vsel %vm912, %v2107, 0
        %v2114 = vsel %vm912, %v2109, 0
        %2116 = vmatprep.subr.mxu0 0.0
        %2117 = vmatpush1.xpose.msra.mxu0 %v2112
        %2118 = vmatprep.subr.mxu0 0.0
        %2119 = vmatpush1.xpose.msra.mxu0 %v2114
        %2120 = vmatprep.subr.mxu0 0.0
        %2121 = vmatpush1.xpose.msra.mxu0 0.0
        %2122 = vmatprep.subr.mxu0 0.0
        %2123 = vmatpush1.xpose.msra.mxu0 0.0
        %2124 = vmatprep.subr.mxu0 0.0
        %2125 = vmatpush1.xpose.msra.mxu0 0.0
        %2126 = vmatprep.subr.mxu0 0.0
        %2127 = vmatpush1.xpose.msra.mxu0 0.0
        %2128 = vmatprep.subr.mxu0 0.0
        %2129 = vmatpush1.xpose.msra.mxu0 0.0
        %2130 = vmatprep.subr.mxu0 0.0
        %2131 = vmatpush1.xpose.msra.mxu0 0.0
        %2132 = vmatprep.subr.mxu0 0.0
        %2133 = vmatpush1.xpose.msra.mxu0 0.0
        %2134 = vmatprep.subr.mxu0 0.0
        %2135 = vmatpush1.xpose.msra.mxu0 0.0
        %2136 = vmatprep.subr.mxu0 0.0
        %2137 = vmatpush1.xpose.msra.mxu0 0.0
        %2138 = vmatprep.subr.mxu0 0.0
        %2139 = vmatpush1.xpose.msra.mxu0 0.0
        %2140 = vmatprep.subr.mxu0 0.0
        %2141 = vmatpush1.xpose.msra.mxu0 0.0
        %2142 = vmatprep.subr.mxu0 0.0
        %2143 = vmatpush1.xpose.msra.mxu0 0.0
        %2144 = vmatprep.subr.mxu0 0.0
        %2145 = vmatpush1.xpose.msra.mxu0 0.0
        %2146 = vmatprep.subr.mxu0 0.0
        %2147 = vmatpush1.xpose.msra.mxu0 0.0
        %2148 = vmatprep.subr.mxu0 0.0
        %2149 = vmatpush1.xpose.msra.mxu0 0.0
        %2150 = vmatprep.subr.mxu0 0.0
        %2151 = vmatpush1.xpose.msra.mxu0 0.0
        %2152 = vmatprep.subr.mxu0 0.0
        %2153 = vmatpush1.xpose.msra.mxu0 0.0
        %2154 = vmatprep.subr.mxu0 0.0
        %2155 = vmatpush1.xpose.msra.mxu0 0.0
        %2156 = vmatprep.subr.mxu0 0.0
        %2157 = vmatpush1.xpose.msra.mxu0 0.0
        %2158 = vmatprep.subr.mxu0 0.0
        %2159 = vmatpush1.xpose.msra.mxu0 0.0
        %2160 = vmatprep.subr.mxu0 0.0
        %2161 = vmatpush1.xpose.msra.mxu0 0.0
        %2162 = vmatprep.subr.mxu0 0.0
        %2163 = vmatpush1.xpose.msra.mxu0 0.0
        %2164 = vmatprep.subr.mxu0 0.0
        %2165 = vmatpush1.xpose.msra.mxu0 0.0
        %2166 = vmatprep.subr.mxu0 0.0
        %2167 = vmatpush1.xpose.msra.mxu0 0.0
        %2168 = vmatprep.subr.mxu0 0.0
        %2169 = vmatpush1.xpose.msra.mxu0 0.0
        %2170 = vmatprep.subr.mxu0 0.0
        %2171 = vmatpush1.xpose.msra.mxu0 0.0
        %2172 = vmatprep.subr.mxu0 0.0
        %2173 = vmatpush1.xpose.msra.mxu0 0.0
        %2174 = vmatprep.subr.mxu0 0.0
        %2175 = vmatpush1.xpose.msra.mxu0 0.0
        %2176 = vmatprep.subr.mxu0 0.0
        %2177 = vmatpush1.xpose.msra.mxu0 0.0
        %2178 = vmatprep.subr.mxu0 0.0
        %2179 = vmatpush1.xpose.msra.mxu0 0.0
        %2180 = vmatprep.mubr.f32.mxu0 0.0
        %2181 = vmatmul.mubr.f32.gmra.mrb[0].mxu0 %v2110
        %v2182 = vpop.f32.mrb[0].mxu0
        %v2183 = vadd.f32 %v911, %v2182
        %v2184 = vpop.f32.mrb[0].mxu0
        %2185 = vdwg.mxu0
        %v2186 = vsel %vm992, %v2183, -inf
        %2187 = vmax.xlane.f32.xlu0 %v2186
        %v2188 = vpop.xlane.xlu0 %2187
        %v2189 = vsub.f32 %v2183, %v2188
        %v2190 = vmul.f32 %v2189, 1.442695
        %v2191 = vpow.pop %v2190
        %v2192 = vsel %vm992, %v2191, 0.0
        %2193 = vadd.xlane.f32.xlu0 %v2192
        %v2194 = vpop.xlane.xlu0 %2193
        %v2195 = vrcp.pop %v2194
        %v2196 = vmul.f32 %v2191, %v2195
        %2197 = vrot.lane.b32.xlu0 %v627, 32
        %v2198 = vpop.permute.xlu0 %2197
        %2199 = vrot.lane.b32.xlu0 %v633, 32
        %v2200 = vpop.permute.xlu0 %2199
        %v2204 = vsel %vm992, %v2196, 0
        %2206 = vmatprep.subr.mxu0 0.0
        %2207 = vmatpush1.msra.mxu0 %v2198
        %2208 = vmatprep.subr.mxu0 0.0
        %2209 = vmatpush1.msra.mxu0 %v2200
        %2210 = vmatprep.subr.mxu0 0.0
        %2211 = vmatpush1.msra.mxu0 0.0
        %2212 = vmatprep.subr.mxu0 0.0
        %2213 = vmatpush1.msra.mxu0 0.0
        %2214 = vmatprep.subr.mxu0 0.0
        %2215 = vmatpush1.msra.mxu0 0.0
        %2216 = vmatprep.subr.mxu0 0.0
        %2217 = vmatpush1.msra.mxu0 0.0
        %2218 = vmatprep.subr.mxu0 0.0
        %2219 = vmatpush1.msra.mxu0 0.0
        %2220 = vmatprep.subr.mxu0 0.0
        %2221 = vmatpush1.msra.mxu0 0.0
        %2222 = vmatprep.subr.mxu0 0.0
        %2223 = vmatpush1.msra.mxu0 0.0
        %2224 = vmatprep.subr.mxu0 0.0
        %2225 = vmatpush1.msra.mxu0 0.0
        %2226 = vmatprep.subr.mxu0 0.0
        %2227 = vmatpush1.msra.mxu0 0.0
        %2228 = vmatprep.subr.mxu0 0.0
        %2229 = vmatpush1.msra.mxu0 0.0
        %2230 = vmatprep.subr.mxu0 0.0
        %2231 = vmatpush1.msra.mxu0 0.0
        %2232 = vmatprep.subr.mxu0 0.0
        %2233 = vmatpush1.msra.mxu0 0.0
        %2234 = vmatprep.subr.mxu0 0.0
        %2235 = vmatpush1.msra.mxu0 0.0
        %2236 = vmatprep.subr.mxu0 0.0
        %2237 = vmatpush1.msra.mxu0 0.0
        %2238 = vmatprep.subr.mxu0 0.0
        %2239 = vmatpush1.msra.mxu0 0.0
        %2240 = vmatprep.subr.mxu0 0.0
        %2241 = vmatpush1.msra.mxu0 0.0
        %2242 = vmatprep.subr.mxu0 0.0
        %2243 = vmatpush1.msra.mxu0 0.0
        %2244 = vmatprep.subr.mxu0 0.0
        %2245 = vmatpush1.msra.mxu0 0.0
        %2246 = vmatprep.subr.mxu0 0.0
        %2247 = vmatpush1.msra.mxu0 0.0
        %2248 = vmatprep.subr.mxu0 0.0
        %2249 = vmatpush1.msra.mxu0 0.0
        %2250 = vmatprep.subr.mxu0 0.0
        %2251 = vmatpush1.msra.mxu0 0.0
        %2252 = vmatprep.subr.mxu0 0.0
        %2253 = vmatpush1.msra.mxu0 0.0
        %2254 = vmatprep.subr.mxu0 0.0
        %2255 = vmatpush1.msra.mxu0 0.0
        %2256 = vmatprep.subr.mxu0 0.0
        %2257 = vmatpush1.msra.mxu0 0.0
        %2258 = vmatprep.subr.mxu0 0.0
        %2259 = vmatpush1.msra.mxu0 0.0
        %2260 = vmatprep.subr.mxu0 0.0
        %2261 = vmatpush1.msra.mxu0 0.0
        %2262 = vmatprep.subr.mxu0 0.0
        %2263 = vmatpush1.msra.mxu0 0.0
        %2264 = vmatprep.subr.mxu0 0.0
        %2265 = vmatpush1.msra.mxu0 0.0
        %2266 = vmatprep.subr.mxu0 0.0
        %2267 = vmatpush1.msra.mxu0 0.0
        %2268 = vmatprep.subr.mxu0 0.0
        %2269 = vmatpush1.msra.mxu0 0.0
        %2270 = vmatprep.mubr.f32.mxu0 0.0
        %2271 = vmatmul.mubr.f32.gmra.mrb[0].mxu0 %v2204
        %v2272 = vpop.f32.mrb[0].mxu0
        %v2273 = vadd.f32 0.0, %v2272
        %v2274 = vpop.f32.mrb[0].mxu0
        %2275 = vdwg.mxu0
        %2277 = vrot.lane.b32.xlu0 %v1248, 32
        %v2278 = vpop.permute.xlu0 %2277
        %2281 = vrot.lane.b32.xlu0 %v1420, 64
        %v2282 = vpop.permute.xlu0 %2281
        %2285 = vrot.lane.b32.xlu0 %v1592, 96
        %v2286 = vpop.permute.xlu0 %2285
        %2289 = vrot.lane.b32.xlu0 %v1929, 32
        %v2290 = vpop.permute.xlu0 %2289
        %2293 = vrot.lane.b32.xlu0 %v2101, 64
        %v2294 = vpop.permute.xlu0 %2293
        %2297 = vrot.lane.b32.xlu0 %v2273, 96
        %v2298 = vpop.permute.xlu0 %2297
        %v2300 = vsel %vm912, %v1074, %v2278
        %vm2301 = vcmask 523264
        %v2302 = vsel %vm2301, %v2300, %v2282
        %vm2303 = vcmask 785408
        %v2304 = vsel %vm2303, %v2302, %v2286
        %v2305 = vsel %vm912, %v1755, %v2290
        %v2306 = vsel %vm2301, %v2305, %v2294
        %v2307 = vsel %vm2303, %v2306, %v2298
        %v2308 = vld [vmem:[#allocation13] sm:$0xff]
        %v2309 = vld [vmem:[#allocation13 + $0x8] sm:$0xff]
        %v2310 = vld [vmem:[#allocation13 + $0x10] sm:$0xff]
        %v2311 = vld [vmem:[#allocation13 + $0x18] sm:$0xff]
        %v2312 = vld [vmem:[#allocation13 + $0x20] sm:$0xff]
        %v2313 = vld [vmem:[#allocation13 + $0x28] sm:$0xff]
        %v2314 = vld [vmem:[#allocation13 + $0x30] sm:$0xff]
        %v2315 = vld [vmem:[#allocation13 + $0x38] sm:$0xff]
        %v2316 = vld [vmem:[#allocation13 + $0x40] sm:$0xff]
        %v2317 = vld [vmem:[#allocation13 + $0x48] sm:$0xff]
        %v2318 = vld [vmem:[#allocation13 + $0x50] sm:$0xff]
        %v2319 = vld [vmem:[#allocation13 + $0x58] sm:$0xff]
        %v2320 = vld [vmem:[#allocation13 + $0x60] sm:$0xff]
        %v2321 = vld [vmem:[#allocation13 + $0x68] sm:$0xff]
        %v2322 = vld [vmem:[#allocation13 + $0x70] sm:$0xff]
        %v2323 = vld [vmem:[#allocation13 + $0x78] sm:$0xff]
        %v2324 = vld [vmem:[#allocation13 + $0x80] sm:$0xff]
        %v2325 = vld [vmem:[#allocation13 + $0x88] sm:$0xff]
        %v2326 = vld [vmem:[#allocation13 + $0x90] sm:$0xff]
        %v2327 = vld [vmem:[#allocation13 + $0x98] sm:$0xff]
        %v2328 = vld [vmem:[#allocation13 + $0xa0] sm:$0xff]
        %v2329 = vld [vmem:[#allocation13 + $0xa8] sm:$0xff]
        %v2330 = vld [vmem:[#allocation13 + $0xb0] sm:$0xff]
        %v2331 = vld [vmem:[#allocation13 + $0xb8] sm:$0xff]
        %v2332 = vld [vmem:[#allocation13 + $0xc0] sm:$0xff]
        %v2333 = vld [vmem:[#allocation13 + $0xc8] sm:$0xff]
        %v2334 = vld [vmem:[#allocation13 + $0xd0] sm:$0xff]
        %v2335 = vld [vmem:[#allocation13 + $0xd8] sm:$0xff]
        %v2336 = vld [vmem:[#allocation13 + $0xe0] sm:$0xff]
        %v2337 = vld [vmem:[#allocation13 + $0xe8] sm:$0xff]
        %v2338 = vld [vmem:[#allocation13 + $0xf0] sm:$0xff]
        %v2339 = vld [vmem:[#allocation13 + $0xf8] sm:$0xff]
        %v2340 = vld [vmem:[#allocation13 + $0x100] sm:$0xff]
        %v2341 = vld [vmem:[#allocation13 + $0x108] sm:$0xff]
        %v2342 = vld [vmem:[#allocation13 + $0x110] sm:$0xff]
        %v2343 = vld [vmem:[#allocation13 + $0x118] sm:$0xff]
        %v2344 = vld [vmem:[#allocation13 + $0x120] sm:$0xff]
        %v2345 = vld [vmem:[#allocation13 + $0x128] sm:$0xff]
        %v2346 = vld [vmem:[#allocation13 + $0x130] sm:$0xff]
        %v2347 = vld [vmem:[#allocation13 + $0x138] sm:$0xff]
        %v2348 = vld [vmem:[#allocation13 + $0x140] sm:$0xff]
        %v2349 = vld [vmem:[#allocation13 + $0x148] sm:$0xff]
        %v2350 = vld [vmem:[#allocation13 + $0x150] sm:$0xff]
        %v2351 = vld [vmem:[#allocation13 + $0x158] sm:$0xff]
        %v2352 = vld [vmem:[#allocation13 + $0x160] sm:$0xff]
        %v2353 = vld [vmem:[#allocation13 + $0x168] sm:$0xff]
        %v2354 = vld [vmem:[#allocation13 + $0x170] sm:$0xff]
        %v2355 = vld [vmem:[#allocation13 + $0x178] sm:$0xff]
        %v2356 = vld [vmem:[#allocation13 + $0x180] sm:$0xff]
        %v2357 = vld [vmem:[#allocation13 + $0x188] sm:$0xff]
        %v2358 = vld [vmem:[#allocation13 + $0x190] sm:$0xff]
        %v2359 = vld [vmem:[#allocation13 + $0x198] sm:$0xff]
        %v2360 = vld [vmem:[#allocation13 + $0x1a0] sm:$0xff]
        %v2361 = vld [vmem:[#allocation13 + $0x1a8] sm:$0xff]
        %v2362 = vld [vmem:[#allocation13 + $0x1b0] sm:$0xff]
        %v2363 = vld [vmem:[#allocation13 + $0x1b8] sm:$0xff]
        %v2364 = vld [vmem:[#allocation13 + $0x1c0] sm:$0xff]
        %v2365 = vld [vmem:[#allocation13 + $0x1c8] sm:$0xff]
        %v2366 = vld [vmem:[#allocation13 + $0x1d0] sm:$0xff]
        %v2367 = vld [vmem:[#allocation13 + $0x1d8] sm:$0xff]
        %v2368 = vld [vmem:[#allocation13 + $0x1e0] sm:$0xff]
        %v2369 = vld [vmem:[#allocation13 + $0x1e8] sm:$0xff]
        %v2370 = vld [vmem:[#allocation13 + $0x1f0] sm:$0xff]
        %v2371 = vld [vmem:[#allocation13 + $0x1f8] sm:$0xff]
        %v2372 = vld [vmem:[%s8] sm:$0x3]
        %v2374 = vlaneseq
        %v2375 = vshrl.u32 %v2374, 7
        %v2376 = vsub.s32 0, %v2375
        %v2377 = vrot.slane %v2372, %v2376
        %v2378 = vlaneseq
        %v2379 = vshrl.u32 %v2378, 7
        %v2380 = vsub.s32 1, %v2379
        %v2381 = vrot.slane %v2372, %v2380
        %2384 = vmatprep.subr.mxu0 %v2309
        %2385 = vmatpush1.msra.mxu0 %v2308
        %2386 = vmatprep.subr.mxu0 %v2311
        %2387 = vmatpush1.msra.mxu0 %v2310
        %2388 = vmatprep.subr.mxu0 %v2313
        %2389 = vmatpush1.msra.mxu0 %v2312
        %2390 = vmatprep.subr.mxu0 %v2315
        %2391 = vmatpush1.msra.mxu0 %v2314
        %2392 = vmatprep.subr.mxu0 %v2317
        %2393 = vmatpush1.msra.mxu0 %v2316
        %2394 = vmatprep.subr.mxu0 %v2319
        %2395 = vmatpush1.msra.mxu0 %v2318
        %2396 = vmatprep.subr.mxu0 %v2321
        %2397 = vmatpush1.msra.mxu0 %v2320
        %2398 = vmatprep.subr.mxu0 %v2323
        %2399 = vmatpush1.msra.mxu0 %v2322
        %2400 = vmatprep.subr.mxu0 %v2325
        %2401 = vmatpush1.msra.mxu0 %v2324
        %2402 = vmatprep.subr.mxu0 %v2327
        %2403 = vmatpush1.msra.mxu0 %v2326
        %2404 = vmatprep.subr.mxu0 %v2329
        %2405 = vmatpush1.msra.mxu0 %v2328
        %2406 = vmatprep.subr.mxu0 %v2331
        %2407 = vmatpush1.msra.mxu0 %v2330
        %2408 = vmatprep.subr.mxu0 %v2333
        %2409 = vmatpush1.msra.mxu0 %v2332
        %2410 = vmatprep.subr.mxu0 %v2335
        %2411 = vmatpush1.msra.mxu0 %v2334
        %2412 = vmatprep.subr.mxu0 %v2337
        %2413 = vmatpush1.msra.mxu0 %v2336
        %2414 = vmatprep.subr.mxu0 %v2339
        %2415 = vmatpush1.msra.mxu0 %v2338
        %2416 = vmatprep.subr.mxu0 %v2341
        %2417 = vmatpush1.msra.mxu0 %v2340
        %2418 = vmatprep.subr.mxu0 %v2343
        %2419 = vmatpush1.msra.mxu0 %v2342
        %2420 = vmatprep.subr.mxu0 %v2345
        %2421 = vmatpush1.msra.mxu0 %v2344
        %2422 = vmatprep.subr.mxu0 %v2347
        %2423 = vmatpush1.msra.mxu0 %v2346
        %2424 = vmatprep.subr.mxu0 %v2349
        %2425 = vmatpush1.msra.mxu0 %v2348
        %2426 = vmatprep.subr.mxu0 %v2351
        %2427 = vmatpush1.msra.mxu0 %v2350
        %2428 = vmatprep.subr.mxu0 %v2353
        %2429 = vmatpush1.msra.mxu0 %v2352
        %2430 = vmatprep.subr.mxu0 %v2355
        %2431 = vmatpush1.msra.mxu0 %v2354
        %2432 = vmatprep.subr.mxu0 %v2357
        %2433 = vmatpush1.msra.mxu0 %v2356
        %2434 = vmatprep.subr.mxu0 %v2359
        %2435 = vmatpush1.msra.mxu0 %v2358
        %2436 = vmatprep.subr.mxu0 %v2361
        %2437 = vmatpush1.msra.mxu0 %v2360
        %2438 = vmatprep.subr.mxu0 %v2363
        %2439 = vmatpush1.msra.mxu0 %v2362
        %2440 = vmatprep.subr.mxu0 %v2365
        %2441 = vmatpush1.msra.mxu0 %v2364
        %2442 = vmatprep.subr.mxu0 %v2367
        %2443 = vmatpush1.msra.mxu0 %v2366
        %2444 = vmatprep.subr.mxu0 %v2369
        %2445 = vmatpush1.msra.mxu0 %v2368
        %2446 = vmatprep.subr.mxu0 %v2371
        %2447 = vmatpush1.msra.mxu0 %v2370
        %2448 = vmatprep.mubr.f32.mxu0 %v2307
        %2449 = vmatmul.mubr.f32.gmra.mrb[0].mxu0 %v2304
        %v2450 = vpop.f32.mrb[0].mxu0
        %v2451 = vadd.f32 %v2377, %v2450
        %v2452 = vpop.f32.mrb[0].mxu0
        %v2453 = vadd.f32 %v2381, %v2452
        %2454 = vdwg.mxu0
        %2455 = vst [vmem:[%s483] sm:$0xff] %v2451
        %2456 = vst [vmem:[%s483 + $0x8] sm:$0xff] %v2453
        %s2457 = sand.u32 %s243, 1
        %s2458 = scalar_lea.sflag [#allocation4], %s2457
        %s2459 = sand.u32 %s243, 1
        %s2460 = smul.addr %s2459, 16
        %s2461 = scalar_lea.vmem [#allocation14], %s2460
        // Predicated region
        $region85: #{tpu_custom_call.1} parent=55 // pred_check
          %p2462 = pneg %p253
        $region86: #{tpu_custom_call.1} parent=55 // pred_check_branch
          %2464 = sbr.rel (%p2462) target = $region88
        $region87: #{tpu_custom_call.1} parent=55 // pred_region
          %s2466 = ssub.s32 256, 256
          %2467 = vsyncadd %s2458, %s2466
          %s2468 = smul.addr %s31, 2
          %s2469 = smul.addr %s2468, 128
          %s2470 = scalar_lea.hbm %s9, %s2469
          %s2472 = sshll.u32 %s2461, 4
          %s2473 = int_to_ptr.vmem [resolvable:$true] %s2472
          %2475 = dma.vmem_to_hbm [thread:$0]  %s2473, 256, %s2470, %s2458
        $region88: #{tpu_custom_call.1} parent=55 // pred_fallthru
          _
      $region56: #{tpu_custom_call.1} parent=5 // pred_fallthru
        _
      %p2476 = scmp.le.s32.totalorder 2, %s26
      // Predicated region
      $region89: #{tpu_custom_call.1} parent=5 // pred_check
        %p2477 = pneg %p2476
      $region90: #{tpu_custom_call.1} parent=5 // pred_check_branch
        %2479 = sbr.rel (%p2477) target = $region92
      $region91: #{tpu_custom_call.1} parent=5 // pred_region
        %s2480 = ssub.s32 %s26, 2
        // Predicated region
        $region93: #{tpu_custom_call.1} parent=91 // pred_check
          %p2481 = pneg %p259
        $region94: #{tpu_custom_call.1} parent=91 // pred_check_branch
          %2483 = sbr.rel (%p2481) target = $region96
        $region95: #{tpu_custom_call.1} parent=91 // pred_region
          %s2484 = sand.u32 %s244, 1
          %s2485 = scalar_lea.sflag [#allocation4], %s2484
          %s2486 = sand.u32 %s244, 1
          %s2487 = smul.addr %s2486, 16
          %s2488 = scalar_lea.vmem [#allocation14], %s2487
          %2489 = dma.done %s2485, 256
        $region96: #{tpu_custom_call.1} parent=91 // pred_fallthru
          _
      $region92: #{tpu_custom_call.1} parent=5 // pred_fallthru
        _
    $region6: #{tpu_custom_call.1} parent=1 // loop_footer
      %s30 = sadd.s32 1, %s26
    $region7: #{tpu_custom_call.1} parent=1 // loop_footer_branch
      %25 = sbr.rel target = $region3
    $region8: #{tpu_custom_call.1} parent=1 // loop_exit
      _
    %2490 = vsyncpa [#allocation3], 1
    %s2491 = scalar_lea.sflag [#allocation3], 1
    %2492 = vsyncpa %s2491, 1
    %2493 = vsyncpa [#allocation6], 1
    %s2494 = scalar_lea.sflag [#allocation6], 1
    %2495 = vsyncpa %s2494, 1
    %2496 = vsyncpa [#allocation9], 1
    %2497 = vsyncpa [#allocation12], 1
    %2498 = vsyncpa [#allocation4], 1
    %s2499 = scalar_lea.sflag [#allocation4], 1
    %2500 = vsyncpa %s2499, 1

</llo_original>
